<compile_context>
chip_gen: v7x
topology: tpu7x:2x2x1
jax: 0.10.0
libtpu: 0.0.40
codegen_flags: <defaults>
</compile_context>

<pallas_src>
import jax
import jax.numpy as jnp
import numpy as np
from jax import lax
from jax.experimental import pallas as pl
from jax.experimental.pallas import tpu as pltpu

H = 16
W = 16
HW = H * W
C1 = 3     # conv0 output channels
C2 = 64    # vgg conv1_1 / conv1_2 channels
KK = 9     # 3x3 taps


def _tap_shifts(lanes):
    """Static roll amounts that bring neighbour (dy-1, dx-1) onto each pixel."""
    shifts = []
    for dy in range(3):
        for dx in range(3):
            s = (dy - 1) * W + (dx - 1)      # flat lane offset of the neighbour
            shifts.append((-s) % lanes)      # roll(x, -s)[i] == x[i + s]
    return shifts


def _make_kernel(b_tile, lanes):
    shifts = _tap_shifts(lanes)

    def kernel(x_ref, w1f_ref, bmap_ref, w2f_ref, b2_ref, mask_ref,
               o_ref, y1, col2, acc):
        # v: (rows, lanes) f32 -> tap-t shifted + boundary-masked view (f32).
        def tap(v, t):
            sh = shifts[t]
            r = v if sh == 0 else pltpu.roll(v, sh, axis=1)
            if t != 4:                       # centre tap: mask is all ones
                r = r * mask_ref[t:t + 1, :]
            return r

        # ---- conv1 (conv0 folded in): K = 9 matmul, im2col kept in-register -
        xrow = x_ref[0]                      # (1, lanes) f32
        col1 = jnp.concatenate([tap(xrow, t) for t in range(KK)], axis=0)
        y1[...] = jnp.maximum(
            jnp.dot(w1f_ref[...], col1.astype(jnp.bfloat16),
                    preferred_element_type=jnp.float32) + bmap_ref[...],
            0.0)                             # (C2, lanes) f32

        # ---- conv2: 3 accumulated K = 192 slabs, bf16 operands, f32 accum ---
        for s in range(3):
            slot = s & 1
            for j in range(3):
                t = 3 * s + j
                col2[slot, j * C2:(j + 1) * C2, :] = (
                    tap(y1[...], t).astype(jnp.bfloat16))
            part = jnp.dot(w2f_ref[:, s * 3 * C2:(s + 1) * 3 * C2],
                           col2[slot],
                           preferred_element_type=jnp.float32)
            if s == 0:
                acc[...] = part
            else:
                acc[...] = acc[...] + part

        # ---- epilogue: per-image bias + ReLU + lane-dense NCHW-order store --
        b2b = jnp.broadcast_to(b2_ref[...], (C2, HW))     # hoisted broadcast
        for b in range(b_tile):
            o_ref[b] = jnp.maximum(acc[:, b * HW:(b + 1) * HW] + b2b, 0.0)

    return kernel


def _fold_params(params, b_tile):
    """Fold conv0 (1x1) into conv1; flatten + bf16-cast weights for the dots."""
    w0, b0, w1, b1, w2, b2 = params
    # conv1 weight with conv0's 1x1 weight folded in: (C2, 9) bf16.
    w1f = jnp.einsum('c,hwcf->hwf', w0[0], w1)                # (3, 3, C2)
    w1f = w1f.reshape(KK, C2).T.astype(jnp.bfloat16)          # (C2, 9)
    # Exact f32 bias map: conv1 applied to the constant-b0 image with the same
    # zero padding the original net applies to conv0's output (+ b1).
    b0_img = jnp.broadcast_to(b0.reshape(1, 1, 1, C1), (1, H, W, C1))
    dn = lax.conv_dimension_numbers(b0_img.shape, w1.shape,
                                    ('NHWC', 'HWIO', 'NHWC'))
    bmap = lax.conv_general_dilated(b0_img, w1, (1, 1), ((1, 1), (1, 1)),
                                    dimension_numbers=dn,
                                    precision=lax.Precision.HIGHEST)
    bmap = bmap + b1.reshape(1, 1, 1, C2)                     # (1, H, W, C2)
    bmap = bmap[0].reshape(HW, C2).T                          # (C2, HW)
    bmap = jnp.tile(bmap, (1, b_tile))                        # (C2, lanes) f32
    # conv2 weight flattened for the K = 9*C2 im2col matmul: (C2, 576) bf16.
    w2f = w2.reshape(KK * C2, C2).T.astype(jnp.bfloat16)
    b2col = b2.reshape(C2, 1)                                 # f32
    return w1f, bmap, w2f, b2col


def _boundary_masks(b_tile):
    """(9, b_tile*HW) f32 1/0 masks: is the (dy-1, dx-1) neighbour in-bounds?"""
    hh = np.arange(HW) // W
    ww = np.arange(HW) % W
    m = np.zeros((KK, HW), np.float32)
    t = 0
    for dy in range(3):
        for dx in range(3):
            ok = ((hh + dy - 1 >= 0) & (hh + dy - 1 < H) &
                  (ww + dx - 1 >= 0) & (ww + dx - 1 < W))
            m[t] = ok.astype(np.float32)
            t += 1
    return jnp.asarray(np.tile(m, (1, b_tile)))


def vgg_l_forward(x_nchw, params, b_tile=16):
    """x_nchw: (N, 1, H, W) float32.  Returns [out] with out: (N, 64, H, W)."""
    N = x_nchw.shape[0]
    # Cap the tile at ceil(N/2) so the "parallel" batch grid has >= 2 steps
    # whenever N >= 2 (both v7x TensorCores get work); amortize per-step
    # overhead with larger tiles when N allows.
    bt = max(1, min(b_tile, -(-N // 2)))
    g = -(-N // bt)
    n_pad = g * bt
    lanes = bt * HW

    x_flat = x_nchw.reshape(N, HW).astype(jnp.float32)
    if n_pad != N:
        x_flat = jnp.concatenate(
            [x_flat, jnp.zeros((n_pad - N, HW), jnp.float32)], axis=0)
    x_rows = x_flat.reshape(g, 1, lanes)       # lane order: (img, h, w)

    w1f, bmap, w2f, b2col = _fold_params(params, bt)
    masks = _boundary_masks(bt)

    # NOTE: w1f/bmap/w2f/b2/masks are grid-invariant (constant index_map), so
    # no re-DMA happens; footprint is small enough that default buffering fits
    # comfortably inside the explicit VMEM budget below on v5e/v6e/v7x.
    out = pl.pallas_call(
        _make_kernel(bt, lanes),
        out_shape=jax.ShapeDtypeStruct((n_pad, C2, HW), jnp.float32),
        grid_spec=pltpu.PrefetchScalarGridSpec(
            num_scalar_prefetch=0,
            grid=(g,),
            in_specs=[
                pl.BlockSpec((1, 1, lanes), lambda i: (i, 0, 0)),   # x
                pl.BlockSpec((C2, KK), lambda i: (0, 0)),           # folded w1
                pl.BlockSpec((C2, lanes), lambda i: (0, 0)),        # bias map
                pl.BlockSpec((C2, KK * C2), lambda i: (0, 0)),      # flat w2
                pl.BlockSpec((C2, 1), lambda i: (0, 0)),            # b2
                pl.BlockSpec((KK, lanes), lambda i: (0, 0)),        # masks
            ],
            out_specs=pl.BlockSpec((bt, C2, HW), lambda i: (i, 0, 0)),
            scratch_shapes=[
                pltpu.VMEM((C2, lanes), jnp.float32),          # relu1 acts
                pltpu.VMEM((2, 3 * C2, lanes), jnp.bfloat16),  # conv2 slab buf
                pltpu.VMEM((C2, lanes), jnp.float32),          # conv2 accum
            ],
        ),
        compiler_params=pltpu.CompilerParams(
            dimension_semantics=("parallel",),
            vmem_limit_bytes=32 * 1024 * 1024),
    )(x_rows, w1f, bmap, w2f, b2col, masks)

    out = out[:N].reshape(N, C2, H, W)
    return [out]   # forward returns a list, like the PyTorch module


def ref_forward(x_nchw, params):
    """Pure-JAX reference (lax.conv, f32) for correctness checking."""
    w0, b0, w1, b1, w2, b2 = params
    x = jnp.transpose(x_nchw, (0, 2, 3, 1))
    y = x * w0.reshape(1, 1, 1, C1) + b0.reshape(1, 1, 1, C1)
    dn1 = lax.conv_dimension_numbers(y.shape, w1.shape,
                                     ('NHWC', 'HWIO', 'NHWC'))
    y = lax.conv_general_dilated(y, w1, (1, 1), ((1, 1), (1, 1)),
                                 dimension_numbers=dn1,
                                 precision=lax.Precision.HIGHEST)
    y = jnp.maximum(y + b1.reshape(1, 1, 1, C2), 0.0)
    dn2 = lax.conv_dimension_numbers(y.shape, w2.shape,
                                     ('NHWC', 'HWIO', 'NHWC'))
    y = lax.conv_general_dilated(y, w2, (1, 1), ((1, 1), (1, 1)),
                                 dimension_numbers=dn2,
                                 precision=lax.Precision.HIGHEST)
    y = jnp.maximum(y + b2.reshape(1, 1, 1, C2), 0.0)
    return jnp.transpose(y, (0, 3, 1, 2))


if __name__ == "__main__":
    key = jax.random.PRNGKey(0)
    k0, k1, k2, k3, k4, k5, kx = jax.random.split(key, 7)

    # Deterministic random stand-ins for the (unavailable) pretrained weights.
    w0 = jax.random.normal(k0, (1, C1), jnp.float32) * 0.5          # conv0 (1->3)
    b0 = jax.random.normal(k1, (1, C1), jnp.float32) * 0.1
    w1 = jax.random.normal(k2, (3, 3, C1, C2), jnp.float32) / np.sqrt(9 * C1)
    b1 = jax.random.normal(k3, (1, C2), jnp.float32) * 0.1
    w2 = jax.random.normal(k4, (3, 3, C2, C2), jnp.float32) / np.sqrt(9 * C2)
    b2 = jax.random.normal(k5, (1, C2), jnp.float32) * 0.1
    params = (w0, b0, w1, b1, w2, b2)

    x = jax.random.normal(kx, (2, 1, H, W), jnp.float32)             # NCHW

    out = vgg_l_forward(x, params)
    out0 = jax.block_until_ready(out[0])

    ref = np.asarray(ref_forward(x, params))
    got = np.asarray(out0)
    assert got.shape == (2, C2, H, W), got.shape
    assert np.allclose(got, ref, rtol=2e-2, atol=2e-2), (
        "max abs diff %g" % np.max(np.abs(got - ref)))

    print("KERNEL_OK")
</pallas_src>

<mosaic_0001>
module attributes {stable_mosaic.version = 11 : i64} {
  func.func @kernel(%arg0: i32, %arg1: memref<1x1x256xf32, #tpu.memory_space<vmem>>, %arg2: memref<64x9xbf16, #tpu.memory_space<vmem>>, %arg3: memref<64x256xf32, #tpu.memory_space<vmem>>, %arg4: memref<64x576xbf16, #tpu.memory_space<vmem>>, %arg5: memref<64x1xf32, #tpu.memory_space<vmem>>, %arg6: memref<9x256xf32, #tpu.memory_space<vmem>>, %arg7: memref<1x64x256xf32, #tpu.memory_space<vmem>>, %arg8: memref<64x256xf32, #tpu.memory_space<vmem>>, %arg9: memref<2x192x256xbf16, #tpu.memory_space<vmem>>, %arg10: memref<64x256xf32, #tpu.memory_space<vmem>>) attributes {dimension_semantics = [#tpu.dimension_semantics<parallel>], iteration_bounds = array<i64: 2>, scalar_prefetch = 0 : i64, scratch_operands = 3 : i64, tpu.core_type = #tpu.core_type<tc>, window_params = [{transform_indices = @transform_0, window_bounds = array<i64: 1, 1, 256>}, {pipeline_mode = #tpu.pipeline_mode<synchronous>, transform_indices = @transform_1, window_bounds = array<i64: 64, 9>}, {pipeline_mode = #tpu.pipeline_mode<synchronous>, transform_indices = @transform_2, window_bounds = array<i64: 64, 256>}, {pipeline_mode = #tpu.pipeline_mode<synchronous>, transform_indices = @transform_3, window_bounds = array<i64: 64, 576>}, {pipeline_mode = #tpu.pipeline_mode<synchronous>, transform_indices = @transform_4, window_bounds = array<i64: 64, 1>}, {pipeline_mode = #tpu.pipeline_mode<synchronous>, transform_indices = @transform_5, window_bounds = array<i64: 9, 256>}, {transform_indices = @transform_6, window_bounds = array<i64: 1, 64, 256>}]} {
    %c0 = arith.constant 0 : index
    %c0_0 = arith.constant 0 : index
    %c0_1 = arith.constant 0 : index
    %0 = vector.load %arg1[%c0, %c0_0, %c0_1] : memref<1x1x256xf32, #tpu.memory_space<vmem>>, vector<1x1x256xf32>
    %1 = vector.shape_cast %0 : vector<1x1x256xf32> to vector<1x256xf32>
    %c17_i32 = arith.constant 17 : i32
    %2 = tpu.dynamic_rotate %1 by %c17_i32 dim 1 : vector<1x256xf32>, i32 -> vector<1x256xf32>
    %c0_2 = arith.constant 0 : index
    %c0_3 = arith.constant 0 : index
    %3 = vector.load %arg6[%c0_2, %c0_3] : memref<9x256xf32, #tpu.memory_space<vmem>>, vector<1x256xf32>
    %4 = arith.mulf %2, %3 : vector<1x256xf32>
    %c16_i32 = arith.constant 16 : i32
    %5 = tpu.dynamic_rotate %1 by %c16_i32 dim 1 : vector<1x256xf32>, i32 -> vector<1x256xf32>
    %c1 = arith.constant 1 : index
    %c0_4 = arith.constant 0 : index
    %6 = vector.load %arg6[%c1, %c0_4] : memref<9x256xf32, #tpu.memory_space<vmem>>, vector<1x256xf32>
    %7 = arith.mulf %5, %6 : vector<1x256xf32>
    %c15_i32 = arith.constant 15 : i32
    %8 = tpu.dynamic_rotate %1 by %c15_i32 dim 1 : vector<1x256xf32>, i32 -> vector<1x256xf32>
    %c2 = arith.constant 2 : index
    %c0_5 = arith.constant 0 : index
    %9 = vector.load %arg6[%c2, %c0_5] : memref<9x256xf32, #tpu.memory_space<vmem>>, vector<1x256xf32>
    %10 = arith.mulf %8, %9 : vector<1x256xf32>
    %c1_i32 = arith.constant 1 : i32
    %11 = tpu.dynamic_rotate %1 by %c1_i32 dim 1 : vector<1x256xf32>, i32 -> vector<1x256xf32>
    %c3 = arith.constant 3 : index
    %c0_6 = arith.constant 0 : index
    %12 = vector.load %arg6[%c3, %c0_6] : memref<9x256xf32, #tpu.memory_space<vmem>>, vector<1x256xf32>
    %13 = arith.mulf %11, %12 : vector<1x256xf32>
    %c255_i32 = arith.constant 255 : i32
    %14 = tpu.dynamic_rotate %1 by %c255_i32 dim 1 : vector<1x256xf32>, i32 -> vector<1x256xf32>
    %c5 = arith.constant 5 : index
    %c0_7 = arith.constant 0 : index
    %15 = vector.load %arg6[%c5, %c0_7] : memref<9x256xf32, #tpu.memory_space<vmem>>, vector<1x256xf32>
    %16 = arith.mulf %14, %15 : vector<1x256xf32>
    %c241_i32 = arith.constant 241 : i32
    %17 = tpu.dynamic_rotate %1 by %c241_i32 dim 1 : vector<1x256xf32>, i32 -> vector<1x256xf32>
    %c6 = arith.constant 6 : index
    %c0_8 = arith.constant 0 : index
    %18 = vector.load %arg6[%c6, %c0_8] : memref<9x256xf32, #tpu.memory_space<vmem>>, vector<1x256xf32>
    %19 = arith.mulf %17, %18 : vector<1x256xf32>
    %c240_i32 = arith.constant 240 : i32
    %20 = tpu.dynamic_rotate %1 by %c240_i32 dim 1 : vector<1x256xf32>, i32 -> vector<1x256xf32>
    %c7 = arith.constant 7 : index
    %c0_9 = arith.constant 0 : index
    %21 = vector.load %arg6[%c7, %c0_9] : memref<9x256xf32, #tpu.memory_space<vmem>>, vector<1x256xf32>
    %22 = arith.mulf %20, %21 : vector<1x256xf32>
    %c239_i32 = arith.constant 239 : i32
    %23 = tpu.dynamic_rotate %1 by %c239_i32 dim 1 : vector<1x256xf32>, i32 -> vector<1x256xf32>
    %c8 = arith.constant 8 : index
    %c0_10 = arith.constant 0 : index
    %24 = vector.load %arg6[%c8, %c0_10] : memref<9x256xf32, #tpu.memory_space<vmem>>, vector<1x256xf32>
    %25 = arith.mulf %23, %24 : vector<1x256xf32>
    %26 = tpu.concatenate %4, %7, %10, %13, %1, %16, %19, %22, %25 in 0 : vector<1x256xf32>, vector<1x256xf32>, vector<1x256xf32>, vector<1x256xf32>, vector<1x256xf32>, vector<1x256xf32>, vector<1x256xf32>, vector<1x256xf32>, vector<1x256xf32> -> vector<9x256xf32>
    %c0_11 = arith.constant 0 : index
    %c0_12 = arith.constant 0 : index
    %27 = vector.load %arg2[%c0_11, %c0_12] : memref<64x9xbf16, #tpu.memory_space<vmem>>, vector<64x9xbf16>
    %28 = arith.truncf %26 : vector<9x256xf32> to vector<9x256xbf16>
    %cst = arith.constant dense<0.000000e+00> : vector<64x256xf32>
    %29 = tpu.matmul %27, %28, %cst {dimension_numbers = #tpu.dot_dimension_numbers<[1], [0], [0], [1], [0, 0, 1, 1], [], []>} : vector<64x9xbf16>, vector<9x256xbf16>, vector<64x256xf32> -> vector<64x256xf32>
    %c0_13 = arith.constant 0 : index
    %c0_14 = arith.constant 0 : index
    %30 = vector.load %arg3[%c0_13, %c0_14] : memref<64x256xf32, #tpu.memory_space<vmem>>, vector<64x256xf32>
    %31 = arith.addf %29, %30 : vector<64x256xf32>
    %cst_15 = arith.constant 0.000000e+00 : f32
    %32 = vector.broadcast %cst_15 : f32 to vector<64x256xf32>
    %33 = arith.maximumf %31, %32 : vector<64x256xf32>
    %c0_16 = arith.constant 0 : index
    %c0_17 = arith.constant 0 : index
    %34 = vector.load %arg8[%c0_16, %c0_17] : memref<64x256xf32, #tpu.memory_space<vmem>>, vector<64x256xf32>
    tpu.vector_store %arg8[%c0_16, %c0_17], %33 {strides = array<i32>} : memref<64x256xf32, #tpu.memory_space<vmem>>, vector<64x256xf32>,
    %c0_18 = arith.constant 0 : index
    %c0_19 = arith.constant 0 : index
    %35 = vector.load %arg8[%c0_18, %c0_19] : memref<64x256xf32, #tpu.memory_space<vmem>>, vector<64x256xf32>
    %c17_i32_20 = arith.constant 17 : i32
    %36 = tpu.dynamic_rotate %35 by %c17_i32_20 dim 1 : vector<64x256xf32>, i32 -> vector<64x256xf32>
    %c0_21 = arith.constant 0 : index
    %c0_22 = arith.constant 0 : index
    %37 = vector.load %arg6[%c0_21, %c0_22] : memref<9x256xf32, #tpu.memory_space<vmem>>, vector<1x256xf32>
    %38 = vector.broadcast %37 : vector<1x256xf32> to vector<64x256xf32>
    %39 = arith.mulf %36, %38 : vector<64x256xf32>
    %40 = arith.truncf %39 : vector<64x256xf32> to vector<64x256xbf16>
    %c0_23 = arith.constant 0 : index
    %c0_24 = arith.constant 0 : index
    %c0_25 = arith.constant 0 : index
    %41 = vector.load %arg9[%c0_23, %c0_24, %c0_25] : memref<2x192x256xbf16, #tpu.memory_space<vmem>>, vector<1x64x256xbf16>
    %42 = vector.shape_cast %41 : vector<1x64x256xbf16> to vector<64x256xbf16>
    %43 = vector.shape_cast %40 : vector<64x256xbf16> to vector<1x64x256xbf16>
    tpu.vector_store %arg9[%c0_23, %c0_24, %c0_25], %43 {strides = array<i32>} : memref<2x192x256xbf16, #tpu.memory_space<vmem>>, vector<1x64x256xbf16>,
    %c0_26 = arith.constant 0 : index
    %c0_27 = arith.constant 0 : index
    %44 = vector.load %arg8[%c0_26, %c0_27] : memref<64x256xf32, #tpu.memory_space<vmem>>, vector<64x256xf32>
    %c16_i32_28 = arith.constant 16 : i32
    %45 = tpu.dynamic_rotate %44 by %c16_i32_28 dim 1 : vector<64x256xf32>, i32 -> vector<64x256xf32>
    %c1_29 = arith.constant 1 : index
    %c0_30 = arith.constant 0 : index
    %46 = vector.load %arg6[%c1_29, %c0_30] : memref<9x256xf32, #tpu.memory_space<vmem>>, vector<1x256xf32>
    %47 = vector.broadcast %46 : vector<1x256xf32> to vector<64x256xf32>
    %48 = arith.mulf %45, %47 : vector<64x256xf32>
    %49 = arith.truncf %48 : vector<64x256xf32> to vector<64x256xbf16>
    %c0_31 = arith.constant 0 : index
    %c64 = arith.constant 64 : index
    %c0_32 = arith.constant 0 : index
    %50 = vector.load %arg9[%c0_31, %c64, %c0_32] : memref<2x192x256xbf16, #tpu.memory_space<vmem>>, vector<1x64x256xbf16>
    %51 = vector.shape_cast %50 : vector<1x64x256xbf16> to vector<64x256xbf16>
    %52 = vector.shape_cast %49 : vector<64x256xbf16> to vector<1x64x256xbf16>
    tpu.vector_store %arg9[%c0_31, %c64, %c0_32], %52 {strides = array<i32>} : memref<2x192x256xbf16, #tpu.memory_space<vmem>>, vector<1x64x256xbf16>,
    %c0_33 = arith.constant 0 : index
    %c0_34 = arith.constant 0 : index
    %53 = vector.load %arg8[%c0_33, %c0_34] : memref<64x256xf32, #tpu.memory_space<vmem>>, vector<64x256xf32>
    %c15_i32_35 = arith.constant 15 : i32
    %54 = tpu.dynamic_rotate %53 by %c15_i32_35 dim 1 : vector<64x256xf32>, i32 -> vector<64x256xf32>
    %c2_36 = arith.constant 2 : index
    %c0_37 = arith.constant 0 : index
    %55 = vector.load %arg6[%c2_36, %c0_37] : memref<9x256xf32, #tpu.memory_space<vmem>>, vector<1x256xf32>
    %56 = vector.broadcast %55 : vector<1x256xf32> to vector<64x256xf32>
    %57 = arith.mulf %54, %56 : vector<64x256xf32>
    %58 = arith.truncf %57 : vector<64x256xf32> to vector<64x256xbf16>
    %c0_38 = arith.constant 0 : index
    %c128 = arith.constant 128 : index
    %c0_39 = arith.constant 0 : index
    %59 = vector.load %arg9[%c0_38, %c128, %c0_39] : memref<2x192x256xbf16, #tpu.memory_space<vmem>>, vector<1x64x256xbf16>
    %60 = vector.shape_cast %59 : vector<1x64x256xbf16> to vector<64x256xbf16>
    %61 = vector.shape_cast %58 : vector<64x256xbf16> to vector<1x64x256xbf16>
    tpu.vector_store %arg9[%c0_38, %c128, %c0_39], %61 {strides = array<i32>} : memref<2x192x256xbf16, #tpu.memory_space<vmem>>, vector<1x64x256xbf16>,
    %c0_40 = arith.constant 0 : index
    %c0_41 = arith.constant 0 : index
    %62 = vector.load %arg4[%c0_40, %c0_41] : memref<64x576xbf16, #tpu.memory_space<vmem>>, vector<64x192xbf16>
    %c0_42 = arith.constant 0 : index
    %c0_43 = arith.constant 0 : index
    %c0_44 = arith.constant 0 : index
    %63 = vector.load %arg9[%c0_42, %c0_43, %c0_44] : memref<2x192x256xbf16, #tpu.memory_space<vmem>>, vector<1x192x256xbf16>
    %64 = vector.shape_cast %63 : vector<1x192x256xbf16> to vector<192x256xbf16>
    %cst_45 = arith.constant dense<0.000000e+00> : vector<64x256xf32>
    %65 = tpu.matmul %62, %64, %cst_45 {dimension_numbers = #tpu.dot_dimension_numbers<[1], [0], [0], [1], [0, 0, 1, 1], [], []>} : vector<64x192xbf16>, vector<192x256xbf16>, vector<64x256xf32> -> vector<64x256xf32>
    %c0_46 = arith.constant 0 : index
    %c0_47 = arith.constant 0 : index
    %66 = vector.load %arg10[%c0_46, %c0_47] : memref<64x256xf32, #tpu.memory_space<vmem>>, vector<64x256xf32>
    tpu.vector_store %arg10[%c0_46, %c0_47], %65 {strides = array<i32>} : memref<64x256xf32, #tpu.memory_space<vmem>>, vector<64x256xf32>,
    %c0_48 = arith.constant 0 : index
    %c0_49 = arith.constant 0 : index
    %67 = vector.load %arg8[%c0_48, %c0_49] : memref<64x256xf32, #tpu.memory_space<vmem>>, vector<64x256xf32>
    %c1_i32_50 = arith.constant 1 : i32
    %68 = tpu.dynamic_rotate %67 by %c1_i32_50 dim 1 : vector<64x256xf32>, i32 -> vector<64x256xf32>
    %c3_51 = arith.constant 3 : index
    %c0_52 = arith.constant 0 : index
    %69 = vector.load %arg6[%c3_51, %c0_52] : memref<9x256xf32, #tpu.memory_space<vmem>>, vector<1x256xf32>
    %70 = vector.broadcast %69 : vector<1x256xf32> to vector<64x256xf32>
    %71 = arith.mulf %68, %70 : vector<64x256xf32>
    %72 = arith.truncf %71 : vector<64x256xf32> to vector<64x256xbf16>
    %c1_53 = arith.constant 1 : index
    %c0_54 = arith.constant 0 : index
    %c0_55 = arith.constant 0 : index
    %73 = vector.load %arg9[%c1_53, %c0_54, %c0_55] : memref<2x192x256xbf16, #tpu.memory_space<vmem>>, vector<1x64x256xbf16>
    %74 = vector.shape_cast %73 : vector<1x64x256xbf16> to vector<64x256xbf16>
    %75 = vector.shape_cast %72 : vector<64x256xbf16> to vector<1x64x256xbf16>
    tpu.vector_store %arg9[%c1_53, %c0_54, %c0_55], %75 {strides = array<i32>} : memref<2x192x256xbf16, #tpu.memory_space<vmem>>, vector<1x64x256xbf16>,
    %c0_56 = arith.constant 0 : index
    %c0_57 = arith.constant 0 : index
    %76 = vector.load %arg8[%c0_56, %c0_57] : memref<64x256xf32, #tpu.memory_space<vmem>>, vector<64x256xf32>
    %77 = arith.truncf %76 : vector<64x256xf32> to vector<64x256xbf16>
    %c1_58 = arith.constant 1 : index
    %c64_59 = arith.constant 64 : index
    %c0_60 = arith.constant 0 : index
    %78 = vector.load %arg9[%c1_58, %c64_59, %c0_60] : memref<2x192x256xbf16, #tpu.memory_space<vmem>>, vector<1x64x256xbf16>
    %79 = vector.shape_cast %78 : vector<1x64x256xbf16> to vector<64x256xbf16>
    %80 = vector.shape_cast %77 : vector<64x256xbf16> to vector<1x64x256xbf16>
    tpu.vector_store %arg9[%c1_58, %c64_59, %c0_60], %80 {strides = array<i32>} : memref<2x192x256xbf16, #tpu.memory_space<vmem>>, vector<1x64x256xbf16>,
    %c0_61 = arith.constant 0 : index
    %c0_62 = arith.constant 0 : index
    %81 = vector.load %arg8[%c0_61, %c0_62] : memref<64x256xf32, #tpu.memory_space<vmem>>, vector<64x256xf32>
    %c255_i32_63 = arith.constant 255 : i32
    %82 = tpu.dynamic_rotate %81 by %c255_i32_63 dim 1 : vector<64x256xf32>, i32 -> vector<64x256xf32>
    %c5_64 = arith.constant 5 : index
    %c0_65 = arith.constant 0 : index
    %83 = vector.load %arg6[%c5_64, %c0_65] : memref<9x256xf32, #tpu.memory_space<vmem>>, vector<1x256xf32>
    %84 = vector.broadcast %83 : vector<1x256xf32> to vector<64x256xf32>
    %85 = arith.mulf %82, %84 : vector<64x256xf32>
    %86 = arith.truncf %85 : vector<64x256xf32> to vector<64x256xbf16>
    %c1_66 = arith.constant 1 : index
    %c128_67 = arith.constant 128 : index
    %c0_68 = arith.constant 0 : index
    %87 = vector.load %arg9[%c1_66, %c128_67, %c0_68] : memref<2x192x256xbf16, #tpu.memory_space<vmem>>, vector<1x64x256xbf16>
    %88 = vector.shape_cast %87 : vector<1x64x256xbf16> to vector<64x256xbf16>
    %89 = vector.shape_cast %86 : vector<64x256xbf16> to vector<1x64x256xbf16>
    tpu.vector_store %arg9[%c1_66, %c128_67, %c0_68], %89 {strides = array<i32>} : memref<2x192x256xbf16, #tpu.memory_space<vmem>>, vector<1x64x256xbf16>,
    %c0_69 = arith.constant 0 : index
    %c192 = arith.constant 192 : index
    %90 = vector.load %arg4[%c0_69, %c192] : memref<64x576xbf16, #tpu.memory_space<vmem>>, vector<64x192xbf16>
    %c1_70 = arith.constant 1 : index
    %c0_71 = arith.constant 0 : index
    %c0_72 = arith.constant 0 : index
    %91 = vector.load %arg9[%c1_70, %c0_71, %c0_72] : memref<2x192x256xbf16, #tpu.memory_space<vmem>>, vector<1x192x256xbf16>
    %92 = vector.shape_cast %91 : vector<1x192x256xbf16> to vector<192x256xbf16>
    %cst_73 = arith.constant dense<0.000000e+00> : vector<64x256xf32>
    %93 = tpu.matmul %90, %92, %cst_73 {dimension_numbers = #tpu.dot_dimension_numbers<[1], [0], [0], [1], [0, 0, 1, 1], [], []>} : vector<64x192xbf16>, vector<192x256xbf16>, vector<64x256xf32> -> vector<64x256xf32>
    %c0_74 = arith.constant 0 : index
    %c0_75 = arith.constant 0 : index
    %94 = vector.load %arg10[%c0_74, %c0_75] : memref<64x256xf32, #tpu.memory_space<vmem>>, vector<64x256xf32>
    %95 = arith.addf %94, %93 : vector<64x256xf32>
    %c0_76 = arith.constant 0 : index
    %c0_77 = arith.constant 0 : index
    %96 = vector.load %arg10[%c0_76, %c0_77] : memref<64x256xf32, #tpu.memory_space<vmem>>, vector<64x256xf32>
    tpu.vector_store %arg10[%c0_76, %c0_77], %95 {strides = array<i32>} : memref<64x256xf32, #tpu.memory_space<vmem>>, vector<64x256xf32>,
    %c0_78 = arith.constant 0 : index
    %c0_79 = arith.constant 0 : index
    %97 = vector.load %arg8[%c0_78, %c0_79] : memref<64x256xf32, #tpu.memory_space<vmem>>, vector<64x256xf32>
    %c241_i32_80 = arith.constant 241 : i32
    %98 = tpu.dynamic_rotate %97 by %c241_i32_80 dim 1 : vector<64x256xf32>, i32 -> vector<64x256xf32>
    %c6_81 = arith.constant 6 : index
    %c0_82 = arith.constant 0 : index
    %99 = vector.load %arg6[%c6_81, %c0_82] : memref<9x256xf32, #tpu.memory_space<vmem>>, vector<1x256xf32>
    %100 = vector.broadcast %99 : vector<1x256xf32> to vector<64x256xf32>
    %101 = arith.mulf %98, %100 : vector<64x256xf32>
    %102 = arith.truncf %101 : vector<64x256xf32> to vector<64x256xbf16>
    %c0_83 = arith.constant 0 : index
    %c0_84 = arith.constant 0 : index
    %c0_85 = arith.constant 0 : index
    %103 = vector.load %arg9[%c0_83, %c0_84, %c0_85] : memref<2x192x256xbf16, #tpu.memory_space<vmem>>, vector<1x64x256xbf16>
    %104 = vector.shape_cast %103 : vector<1x64x256xbf16> to vector<64x256xbf16>
    %105 = vector.shape_cast %102 : vector<64x256xbf16> to vector<1x64x256xbf16>
    tpu.vector_store %arg9[%c0_83, %c0_84, %c0_85], %105 {strides = array<i32>} : memref<2x192x256xbf16, #tpu.memory_space<vmem>>, vector<1x64x256xbf16>,
    %c0_86 = arith.constant 0 : index
    %c0_87 = arith.constant 0 : index
    %106 = vector.load %arg8[%c0_86, %c0_87] : memref<64x256xf32, #tpu.memory_space<vmem>>, vector<64x256xf32>
    %c240_i32_88 = arith.constant 240 : i32
    %107 = tpu.dynamic_rotate %106 by %c240_i32_88 dim 1 : vector<64x256xf32>, i32 -> vector<64x256xf32>
    %c7_89 = arith.constant 7 : index
    %c0_90 = arith.constant 0 : index
    %108 = vector.load %arg6[%c7_89, %c0_90] : memref<9x256xf32, #tpu.memory_space<vmem>>, vector<1x256xf32>
    %109 = vector.broadcast %108 : vector<1x256xf32> to vector<64x256xf32>
    %110 = arith.mulf %107, %109 : vector<64x256xf32>
    %111 = arith.truncf %110 : vector<64x256xf32> to vector<64x256xbf16>
    %c0_91 = arith.constant 0 : index
    %c64_92 = arith.constant 64 : index
    %c0_93 = arith.constant 0 : index
    %112 = vector.load %arg9[%c0_91, %c64_92, %c0_93] : memref<2x192x256xbf16, #tpu.memory_space<vmem>>, vector<1x64x256xbf16>
    %113 = vector.shape_cast %112 : vector<1x64x256xbf16> to vector<64x256xbf16>
    %114 = vector.shape_cast %111 : vector<64x256xbf16> to vector<1x64x256xbf16>
    tpu.vector_store %arg9[%c0_91, %c64_92, %c0_93], %114 {strides = array<i32>} : memref<2x192x256xbf16, #tpu.memory_space<vmem>>, vector<1x64x256xbf16>,
    %c0_94 = arith.constant 0 : index
    %c0_95 = arith.constant 0 : index
    %115 = vector.load %arg8[%c0_94, %c0_95] : memref<64x256xf32, #tpu.memory_space<vmem>>, vector<64x256xf32>
    %c239_i32_96 = arith.constant 239 : i32
    %116 = tpu.dynamic_rotate %115 by %c239_i32_96 dim 1 : vector<64x256xf32>, i32 -> vector<64x256xf32>
    %c8_97 = arith.constant 8 : index
    %c0_98 = arith.constant 0 : index
    %117 = vector.load %arg6[%c8_97, %c0_98] : memref<9x256xf32, #tpu.memory_space<vmem>>, vector<1x256xf32>
    %118 = vector.broadcast %117 : vector<1x256xf32> to vector<64x256xf32>
    %119 = arith.mulf %116, %118 : vector<64x256xf32>
    %120 = arith.truncf %119 : vector<64x256xf32> to vector<64x256xbf16>
    %c0_99 = arith.constant 0 : index
    %c128_100 = arith.constant 128 : index
    %c0_101 = arith.constant 0 : index
    %121 = vector.load %arg9[%c0_99, %c128_100, %c0_101] : memref<2x192x256xbf16, #tpu.memory_space<vmem>>, vector<1x64x256xbf16>
    %122 = vector.shape_cast %121 : vector<1x64x256xbf16> to vector<64x256xbf16>
    %123 = vector.shape_cast %120 : vector<64x256xbf16> to vector<1x64x256xbf16>
    tpu.vector_store %arg9[%c0_99, %c128_100, %c0_101], %123 {strides = array<i32>} : memref<2x192x256xbf16, #tpu.memory_space<vmem>>, vector<1x64x256xbf16>,
    %c0_102 = arith.constant 0 : index
    %c384 = arith.constant 384 : index
    %124 = vector.load %arg4[%c0_102, %c384] : memref<64x576xbf16, #tpu.memory_space<vmem>>, vector<64x192xbf16>
    %c0_103 = arith.constant 0 : index
    %c0_104 = arith.constant 0 : index
    %c0_105 = arith.constant 0 : index
    %125 = vector.load %arg9[%c0_103, %c0_104, %c0_105] : memref<2x192x256xbf16, #tpu.memory_space<vmem>>, vector<1x192x256xbf16>
    %126 = vector.shape_cast %125 : vector<1x192x256xbf16> to vector<192x256xbf16>
    %cst_106 = arith.constant dense<0.000000e+00> : vector<64x256xf32>
    %127 = tpu.matmul %124, %126, %cst_106 {dimension_numbers = #tpu.dot_dimension_numbers<[1], [0], [0], [1], [0, 0, 1, 1], [], []>} : vector<64x192xbf16>, vector<192x256xbf16>, vector<64x256xf32> -> vector<64x256xf32>
    %c0_107 = arith.constant 0 : index
    %c0_108 = arith.constant 0 : index
    %128 = vector.load %arg10[%c0_107, %c0_108] : memref<64x256xf32, #tpu.memory_space<vmem>>, vector<64x256xf32>
    %129 = arith.addf %128, %127 : vector<64x256xf32>
    %c0_109 = arith.constant 0 : index
    %c0_110 = arith.constant 0 : index
    %130 = vector.load %arg10[%c0_109, %c0_110] : memref<64x256xf32, #tpu.memory_space<vmem>>, vector<64x256xf32>
    tpu.vector_store %arg10[%c0_109, %c0_110], %129 {strides = array<i32>} : memref<64x256xf32, #tpu.memory_space<vmem>>, vector<64x256xf32>,
    %c0_111 = arith.constant 0 : index
    %c0_112 = arith.constant 0 : index
    %131 = vector.load %arg5[%c0_111, %c0_112] : memref<64x1xf32, #tpu.memory_space<vmem>>, vector<64x1xf32>
    %132 = vector.shape_cast %131 : vector<64x1xf32> to vector<64x1xf32>
    %133 = vector.broadcast %132 : vector<64x1xf32> to vector<64x256xf32>
    %c0_113 = arith.constant 0 : index
    %c0_114 = arith.constant 0 : index
    %134 = vector.load %arg10[%c0_113, %c0_114] : memref<64x256xf32, #tpu.memory_space<vmem>>, vector<64x256xf32>
    %135 = arith.addf %134, %133 : vector<64x256xf32>
    %cst_115 = arith.constant 0.000000e+00 : f32
    %136 = vector.broadcast %cst_115 : f32 to vector<64x256xf32>
    %137 = arith.maximumf %135, %136 : vector<64x256xf32>
    %c0_116 = arith.constant 0 : index
    %c0_117 = arith.constant 0 : index
    %c0_118 = arith.constant 0 : index
    %138 = vector.load %arg7[%c0_116, %c0_117, %c0_118] : memref<1x64x256xf32, #tpu.memory_space<vmem>>, vector<1x64x256xf32>
    %139 = vector.shape_cast %138 : vector<1x64x256xf32> to vector<64x256xf32>
    %140 = vector.shape_cast %137 : vector<64x256xf32> to vector<1x64x256xf32>
    tpu.vector_store %arg7[%c0_116, %c0_117, %c0_118], %140 {strides = array<i32>} : memref<1x64x256xf32, #tpu.memory_space<vmem>>, vector<1x64x256xf32>,
    return
  }
  func.func @transform_0(%arg0: i32) -> (i32, i32, i32) {
    %c0_i32 = arith.constant 0 : i32
    %c0_i32_0 = arith.constant 0 : i32
    %c0_i32_1 = arith.constant 0 : i32
    return %arg0, %c0_i32, %c0_i32_0 : i32, i32, i32
  }
  func.func @transform_1(%arg0: i32) -> (i32, i32) {
    %c0_i32 = arith.constant 0 : i32
    %c0_i32_0 = arith.constant 0 : i32
    %c0_i32_1 = arith.constant 0 : i32
    return %c0_i32, %c0_i32_0 : i32, i32
  }
  func.func @transform_2(%arg0: i32) -> (i32, i32) {
    %c0_i32 = arith.constant 0 : i32
    %c0_i32_0 = arith.constant 0 : i32
    %c0_i32_1 = arith.constant 0 : i32
    return %c0_i32, %c0_i32_0 : i32, i32
  }
  func.func @transform_3(%arg0: i32) -> (i32, i32) {
    %c0_i32 = arith.constant 0 : i32
    %c0_i32_0 = arith.constant 0 : i32
    %c0_i32_1 = arith.constant 0 : i32
    return %c0_i32, %c0_i32_0 : i32, i32
  }
  func.func @transform_4(%arg0: i32) -> (i32, i32) {
    %c0_i32 = arith.constant 0 : i32
    %c0_i32_0 = arith.constant 0 : i32
    %c0_i32_1 = arith.constant 0 : i32
    return %c0_i32, %c0_i32_0 : i32, i32
  }
  func.func @transform_5(%arg0: i32) -> (i32, i32) {
    %c0_i32 = arith.constant 0 : i32
    %c0_i32_0 = arith.constant 0 : i32
    %c0_i32_1 = arith.constant 0 : i32
    return %c0_i32, %c0_i32_0 : i32, i32
  }
  func.func @transform_6(%arg0: i32) -> (i32, i32, i32) {
    %c0_i32 = arith.constant 0 : i32
    %c0_i32_0 = arith.constant 0 : i32
    %c0_i32_1 = arith.constant 0 : i32
    return %arg0, %c0_i32, %c0_i32_0 : i32, i32, i32
  }
}

</mosaic_0001>

<llo_original>
// kernel: tpu_custom_call.1
$region0: #{tpu_custom_call.1}
  #allocation0 [shape = 'u32[]', space=smem, size = 0x4, offset = 0x4, fixed_abs, tag = 'smem constant byte address 0x4 - core index']
  #allocation1 [shape = 'u32[144,128]{1,0:T(1,128)}', space=vmem, size = 0x12000, scoped, tag = 'internal scratch']
  #allocation2 [shape = 'f32[64,256]{1,0:T(8,128)}', space=vmem, size = 0x10000, scoped, tag = 'scratch operand']
  #allocation3 [shape = 'bf16[2,192,256]{2,1,0:T(16,128)(2,1)}', space=vmem, size = 0x30000, scoped, tag = 'scratch operand']
  #allocation4 [shape = 'f32[64,256]{1,0:T(8,128)}', space=vmem, size = 0x10000, scoped, tag = 'scratch operand']
  %s0 = inlined_call_operand.vmem [shape: f32[2,1,256], index: 0, kind: input, shape index: {}]
  %s1 = inlined_call_operand.vmem [shape: bf16[64,9], index: 1, kind: input, shape index: {}]
  %s2 = inlined_call_operand.hbm [shape: f32[64,256], index: 2, kind: input, shape index: {}]
  %s3 = inlined_call_operand.hbm [shape: bf16[64,576], index: 3, kind: input, shape index: {}]
  %s4 = inlined_call_operand.vmem [shape: f32[64,1], index: 4, kind: input, shape index: {}]
  %s5 = inlined_call_operand.vmem [shape: f32[9,256], index: 5, kind: input, shape index: {}]
  %s6 = inlined_call_operand.hbm [shape: f32[2,64,256], index: 6, kind: output, shape index: {}]
  %s7 = sld [smem:[#allocation0]]
  $region65: #{tpu_custom_call.1} parent=0
    _
  %s9 = ssub.s32 1, %s7
  %s10 = scalar_select 0, %s9, %s7
  $region1: #{tpu_custom_call.1} parent=0
    #allocation5 [shape = 'u8[65536]{0}', space=vmem, size = 0x10000, scoped, tag = 'input window, operand 2, single buffered']
    #allocation6 [shape = 's32[2]{0}', space=sflag, size = 0x8, scoped, tag = 'scoped memory for tpu_custom_call.1']
    #allocation7 [shape = 's32[2]{0}', space=sflag, size = 0x8, scoped, tag = 'scoped memory for tpu_custom_call.1']
    #allocation8 [shape = 'u8[81920]{0}', space=vmem, size = 0x14000, scoped, tag = 'input window, operand 3, single buffered']
    #allocation9 [shape = 's32[1]{0}', space=sflag, size = 0x4, scoped, tag = 'scoped memory for tpu_custom_call.1']
    #allocation10 [shape = 'u8[131072]{0}', space=vmem, size = 0x20000, scoped, tag = 'output window, operand 0']
    %11 = vsyncpa [#allocation6], 0
    %12 = vsyncpa [#allocation9], 0
    %13 = vsyncpa [#allocation7], 0
    %s14 = scalar_lea.sflag [#allocation7], 1
    %15 = vsyncpa %s14, 0
    loop: start=0, step=1, limit=4
    $region2: #{tpu_custom_call.1} parent=1 // loop_pre_header
      _
    $region3: #{tpu_custom_call.1} parent=1 // loop_header
      %s17 = sphi 0, %s21
      %p18 = scmp.ge.s32.totalorder %s17, 4
      %s27 = sphi 0, %s29
      %s30 = sphi 0, %s27
      %s31 = sphi 0, %s30
      %s47 = sphi 0, %s31
      %s51 = sphi 0, %s51
      %s53 = sphi 0, %s51
      %s54 = sphi 0, %s53
      %s68 = sphi 0, %s54
      %s72 = sphi 0, %s72
      %s74 = sphi 0, %s72
      %s75 = sphi 0, %s74
      %s89 = sphi 0, %s75
      %s93 = sphi 0, %s93
      %s95 = sphi 0, %s93
      %s96 = sphi 0, %s95
      %s110 = sphi 0, %s96
      %s114 = sphi 0, %s114
      %s116 = sphi 0, %s114
      %s117 = sphi 0, %s116
      %s131 = sphi 0, %s117
      %s135 = sphi 0, %s135
      %s137 = sphi 0, %s135
      %s138 = sphi 0, %s137
      %s152 = sphi 0, %s138
      %s158 = sphi 0, %s160
      %s161 = sphi 0, %s158
      %s162 = sphi 0, %s161
      %s178 = sphi 0, %s162
    $region4: #{tpu_custom_call.1} parent=1 // loop_header_branch
      %20 = sbr.rel (%p18) target = $region8
    $region5: #{tpu_custom_call.1} parent=1 // loop_body
      %s22 = ssub.s32 %s17, 1
      %s23 = ssub.s32 %s17, 2
      %s24 = sadd.s32 %s17, 1
      %s25 = ssub.s32 %s17, %s24
      %p26 = scmp.eq.s32.totalorder %s25, 0
      %s28 = sadd.s32 %s27, 1
      %s29 = scalar_select %p26, %s27, %s28
      %p32 = pneg %p26
      %p33 = scmp.eq.s32.totalorder %s17, 1
      %p34 = por %p32, %p33
      %p35 = scmp.ne.s32.totalorder %s27, %s30
      %p36 = scmp.eq.s32.totalorder %s17, 0
      %p37 = por %p35, %p36
      %p38 = scmp.ne.s32.totalorder %s27, %s30
      %p39 = scmp.eq.s32.totalorder %s22, 1
      %p40 = por %p38, %p39
      %p41 = scmp.ne.s32.totalorder %s30, %s31
      %p42 = scmp.eq.s32.totalorder %s22, 0
      %p43 = por %p41, %p42
      %p44 = scmp.ne.s32.totalorder %s30, %s31
      %p45 = scmp.eq.s32.totalorder %s23, 1
      %p46 = por %p44, %p45
      %p48 = scmp.ne.s32.totalorder %s31, %s47
      %p49 = scmp.eq.s32.totalorder %s23, 0
      %p50 = por %p48, %p49
      %s52 = sadd.s32 %s51, 1
      %p55 = scmp.eq.s32.totalorder %s17, 1
      %p56 = scmp.ne.s32.totalorder %s51, %s53
      %p57 = scmp.eq.s32.totalorder %s17, 0
      %p58 = por %p56, %p57
      %p59 = scmp.ne.s32.totalorder %s51, %s53
      %p60 = scmp.eq.s32.totalorder %s22, 1
      %p61 = por %p59, %p60
      %p62 = scmp.ne.s32.totalorder %s53, %s54
      %p63 = scmp.eq.s32.totalorder %s22, 0
      %p64 = por %p62, %p63
      %p65 = scmp.ne.s32.totalorder %s53, %s54
      %p66 = scmp.eq.s32.totalorder %s23, 1
      %p67 = por %p65, %p66
      %p69 = scmp.ne.s32.totalorder %s54, %s68
      %p70 = scmp.eq.s32.totalorder %s23, 0
      %p71 = por %p69, %p70
      %s73 = sadd.s32 %s72, 1
      %p76 = scmp.eq.s32.totalorder %s17, 1
      %p77 = scmp.ne.s32.totalorder %s72, %s74
      %p78 = scmp.eq.s32.totalorder %s17, 0
      %p79 = por %p77, %p78
      %p80 = scmp.ne.s32.totalorder %s72, %s74
      %p81 = scmp.eq.s32.totalorder %s22, 1
      %p82 = por %p80, %p81
      %p83 = scmp.ne.s32.totalorder %s74, %s75
      %p84 = scmp.eq.s32.totalorder %s22, 0
      %p85 = por %p83, %p84
      %p86 = scmp.ne.s32.totalorder %s74, %s75
      %p87 = scmp.eq.s32.totalorder %s23, 1
      %p88 = por %p86, %p87
      %p90 = scmp.ne.s32.totalorder %s75, %s89
      %p91 = scmp.eq.s32.totalorder %s23, 0
      %p92 = por %p90, %p91
      %s94 = sadd.s32 %s93, 1
      %p97 = scmp.eq.s32.totalorder %s17, 1
      %p98 = scmp.ne.s32.totalorder %s93, %s95
      %p99 = scmp.eq.s32.totalorder %s17, 0
      %p100 = por %p98, %p99
      %p101 = scmp.ne.s32.totalorder %s93, %s95
      %p102 = scmp.eq.s32.totalorder %s22, 1
      %p103 = por %p101, %p102
      %p104 = scmp.ne.s32.totalorder %s95, %s96
      %p105 = scmp.eq.s32.totalorder %s22, 0
      %p106 = por %p104, %p105
      %p107 = scmp.ne.s32.totalorder %s95, %s96
      %p108 = scmp.eq.s32.totalorder %s23, 1
      %p109 = por %p107, %p108
      %p111 = scmp.ne.s32.totalorder %s96, %s110
      %p112 = scmp.eq.s32.totalorder %s23, 0
      %p113 = por %p111, %p112
      %s115 = sadd.s32 %s114, 1
      %p118 = scmp.eq.s32.totalorder %s17, 1
      %p119 = scmp.ne.s32.totalorder %s114, %s116
      %p120 = scmp.eq.s32.totalorder %s17, 0
      %p121 = por %p119, %p120
      %p122 = scmp.ne.s32.totalorder %s114, %s116
      %p123 = scmp.eq.s32.totalorder %s22, 1
      %p124 = por %p122, %p123
      %p125 = scmp.ne.s32.totalorder %s116, %s117
      %p126 = scmp.eq.s32.totalorder %s22, 0
      %p127 = por %p125, %p126
      %p128 = scmp.ne.s32.totalorder %s116, %s117
      %p129 = scmp.eq.s32.totalorder %s23, 1
      %p130 = por %p128, %p129
      %p132 = scmp.ne.s32.totalorder %s117, %s131
      %p133 = scmp.eq.s32.totalorder %s23, 0
      %p134 = por %p132, %p133
      %s136 = sadd.s32 %s135, 1
      %p139 = scmp.eq.s32.totalorder %s17, 1
      %p140 = scmp.ne.s32.totalorder %s135, %s137
      %p141 = scmp.eq.s32.totalorder %s17, 0
      %p142 = por %p140, %p141
      %p143 = scmp.ne.s32.totalorder %s135, %s137
      %p144 = scmp.eq.s32.totalorder %s22, 1
      %p145 = por %p143, %p144
      %p146 = scmp.ne.s32.totalorder %s137, %s138
      %p147 = scmp.eq.s32.totalorder %s22, 0
      %p148 = por %p146, %p147
      %p149 = scmp.ne.s32.totalorder %s137, %s138
      %p150 = scmp.eq.s32.totalorder %s23, 1
      %p151 = por %p149, %p150
      %p153 = scmp.ne.s32.totalorder %s138, %s152
      %p154 = scmp.eq.s32.totalorder %s23, 0
      %p155 = por %p153, %p154
      %s156 = ssub.s32 %s17, %s24
      %p157 = scmp.eq.s32.totalorder %s156, 0
      %s159 = sadd.s32 %s158, 1
      %s160 = scalar_select %p157, %s158, %s159
      %p163 = pneg %p157
      %p164 = scmp.eq.s32.totalorder %s17, 1
      %p165 = por %p163, %p164
      %p166 = scmp.ne.s32.totalorder %s158, %s161
      %p167 = scmp.eq.s32.totalorder %s17, 0
      %p168 = por %p166, %p167
      %p169 = scmp.ne.s32.totalorder %s158, %s161
      %p170 = scmp.eq.s32.totalorder %s22, 1
      %p171 = por %p169, %p170
      %p172 = scmp.ne.s32.totalorder %s161, %s162
      %p173 = scmp.eq.s32.totalorder %s22, 0
      %p174 = por %p172, %p173
      %p175 = scmp.ne.s32.totalorder %s161, %s162
      %p176 = scmp.eq.s32.totalorder %s23, 1
      %p177 = por %p175, %p176
      %p179 = scmp.ne.s32.totalorder %s162, %s178
      %p180 = scmp.eq.s32.totalorder %s23, 0
      %p181 = por %p179, %p180
      %p182 = scmp.le.s32.totalorder 1, %s17
      %p183 = scmp.lt.s32.totalorder %s17, 3
      %p184 = pnand %p182, %p183
      %p185 = pneg %p184
      // Predicated region
      $region9: #{tpu_custom_call.1} parent=5 // pred_check
        _
      $region10: #{tpu_custom_call.1} parent=5 // pred_check_branch
        %187 = sbr.rel (%p184) target = $region12
      $region11: #{tpu_custom_call.1} parent=5 // pred_region
        %s188 = ssub.s32 %s17, 1
        // Predicated region
        $region13: #{tpu_custom_call.1} parent=11 // pred_check
          %p189 = pneg %p64
        $region14: #{tpu_custom_call.1} parent=11 // pred_check_branch
          %191 = sbr.rel (%p189) target = $region16
        $region15: #{tpu_custom_call.1} parent=11 // pred_region
          _
        $region16: #{tpu_custom_call.1} parent=11 // pred_fallthru
          _
        // Predicated region
        $region17: #{tpu_custom_call.1} parent=11 // pred_check
          %p192 = pneg %p85
        $region18: #{tpu_custom_call.1} parent=11 // pred_check_branch
          %194 = sbr.rel (%p192) target = $region20
        $region19: #{tpu_custom_call.1} parent=11 // pred_region
          %s196 = ssub.s32 2048, 2048
          %197 = vsyncadd [#allocation6], %s196
          %s198 = sshll.u32 [#allocation5], 4
          %s199 = int_to_ptr.vmem [resolvable:$true] %s198
          %204 = dma.hbm_to_vmem [thread:$0]  %s2, 2048, %s199, [#allocation6], 256, 256, 16
        $region20: #{tpu_custom_call.1} parent=11 // pred_fallthru
          _
        // Predicated region
        $region21: #{tpu_custom_call.1} parent=11 // pred_check
          %p205 = pneg %p106
        $region22: #{tpu_custom_call.1} parent=11 // pred_check_branch
          %207 = sbr.rel (%p205) target = $region24
        $region23: #{tpu_custom_call.1} parent=11 // pred_region
          %s209 = ssub.s32 2560, 2560
          %210 = vsyncadd [#allocation9], %s209
          %s211 = sshll.u32 [#allocation8], 4
          %s212 = int_to_ptr.vmem [resolvable:$true] %s211
          %217 = dma.hbm_to_vmem [thread:$0]  %s3, 2560, %s212, [#allocation9], 320, 320, 20
        $region24: #{tpu_custom_call.1} parent=11 // pred_fallthru
          _
        // Predicated region
        $region25: #{tpu_custom_call.1} parent=11 // pred_check
          %p218 = pneg %p127
        $region26: #{tpu_custom_call.1} parent=11 // pred_check_branch
          %220 = sbr.rel (%p218) target = $region28
        $region27: #{tpu_custom_call.1} parent=11 // pred_region
          _
        $region28: #{tpu_custom_call.1} parent=11 // pred_fallthru
          _
        // Predicated region
        $region29: #{tpu_custom_call.1} parent=11 // pred_check
          %p221 = pneg %p148
        $region30: #{tpu_custom_call.1} parent=11 // pred_check_branch
          %223 = sbr.rel (%p221) target = $region32
        $region31: #{tpu_custom_call.1} parent=11 // pred_region
          _
        $region32: #{tpu_custom_call.1} parent=11 // pred_fallthru
          _
      $region12: #{tpu_custom_call.1} parent=5 // pred_fallthru
        _
      %p224 = scmp.lt.s32.totalorder %s17, 2
      // Predicated region
      $region33: #{tpu_custom_call.1} parent=5 // pred_check
        %p225 = pneg %p224
      $region34: #{tpu_custom_call.1} parent=5 // pred_check_branch
        %227 = sbr.rel (%p225) target = $region36
      $region35: #{tpu_custom_call.1} parent=5 // pred_region
        // Predicated region
        $region37: #{tpu_custom_call.1} parent=35 // pred_check
          %p228 = pneg %p37
        $region38: #{tpu_custom_call.1} parent=35 // pred_check_branch
          %230 = sbr.rel (%p228) target = $region40
        $region39: #{tpu_custom_call.1} parent=35 // pred_region
          %p231 = scmp.lt.s32.totalorder %s17, 1
          %s232 = scalar_select %p231, %s17, 1
          %s233 = smul.addr %s232, 2
          %s234 = scalar_lea.vmem %s0, %s233
        $region40: #{tpu_custom_call.1} parent=35 // pred_fallthru
          _
      $region36: #{tpu_custom_call.1} parent=5 // pred_fallthru
        _
      %p235 = scmp.le.s32.totalorder 1, %s17
      %p236 = scmp.lt.s32.totalorder %s17, 3
      %p237 = pnand %p235, %p236
      %p238 = pneg %p237
      // Predicated region
      $region41: #{tpu_custom_call.1} parent=5 // pred_check
        _
      $region42: #{tpu_custom_call.1} parent=5 // pred_check_branch
        %240 = sbr.rel (%p237) target = $region44
      $region43: #{tpu_custom_call.1} parent=5 // pred_region
        %s241 = ssub.s32 %s17, 1
        // Predicated region
        $region45: #{tpu_custom_call.1} parent=43 // pred_check
          %p242 = pneg %p85
        $region46: #{tpu_custom_call.1} parent=43 // pred_check_branch
          %244 = sbr.rel (%p242) target = $region48
        $region47: #{tpu_custom_call.1} parent=43 // pred_region
          %245 = dma.done [#allocation6], 2048
        $region48: #{tpu_custom_call.1} parent=43 // pred_fallthru
          _
        // Predicated region
        $region49: #{tpu_custom_call.1} parent=43 // pred_check
          %p246 = pneg %p106
        $region50: #{tpu_custom_call.1} parent=43 // pred_check_branch
          %248 = sbr.rel (%p246) target = $region52
        $region51: #{tpu_custom_call.1} parent=43 // pred_region
          %249 = dma.done [#allocation9], 2560
        $region52: #{tpu_custom_call.1} parent=43 // pred_fallthru
          _
        %p250 = scmp.lt.s32.totalorder %s22, 1
        %s251 = scalar_select %p250, %s22, 1
        %s252 = smul.addr %s251, 2
        %s253 = scalar_lea.vmem %s0, %s252
        %p254 = pneg %p43
        %p255 = pneg %p40
        %p256 = pneg %p64
        %p257 = pneg %p61
        %p258 = pneg %p85
        %p259 = pneg %p82
        %p260 = pneg %p106
        %p261 = pneg %p103
        %p262 = pneg %p127
        %p263 = pneg %p124
        %p264 = pneg %p148
        %p265 = pneg %p145
        %p266 = pneg %p174
        %p267 = pneg %p171
        %s268 = sand.u32 %s161, 1
        %s269 = scalar_lea.sflag [#allocation7], %s268
        %s270 = sand.u32 %s161, 1
        %s271 = smul.addr %s270, 128
        %s272 = scalar_lea.vmem [#allocation10], %s271
        %p273 = scmp.lt.s32.totalorder %s22, 1
        %s274 = scalar_select %p273, %s22, 1
        %s275 = smul.addr %s274, 2
        %s276 = scalar_lea.vmem %s0, %s275
        %v278 = vld [vmem:[%s276] sm:$0x3]
        %v280 = vlaneseq
        %v281 = vshrl.u32 %v280, 7
        %v282 = vsub.s32 0, %v281
        %v283 = vrot.slane %v278, %v282
        %v284 = vlaneseq
        %v285 = vshrl.u32 %v284, 7
        %v286 = vsub.s32 1, %v285
        %v287 = vrot.slane %v278, %v286
        %290 = vrot.lane.b32.xlu0 %v283, 17
        %v291 = vpop.permute.xlu0 %290
        %292 = vrot.lane.b32.xlu0 %v287, 17
        %v293 = vpop.permute.xlu0 %292
        %v294 = vlaneseq
        %v295 = vand.u32 %v294, 127
        %vm296 = vcmp.lt.s32.totalorder %v295, 17
        %v297 = vsel %vm296, %v291, %v293
        %v298 = vsel %vm296, %v293, %v291
        %v299 = vld [vmem:[%s5] ss:$8 sm:$0x3]
        %v301 = vlaneseq
        %v302 = vshrl.u32 %v301, 7
        %v303 = vsub.s32 0, %v302
        %v304 = vrot.slane %v299, %v303
        %v305 = vlaneseq
        %v306 = vshrl.u32 %v305, 7
        %v307 = vsub.s32 1, %v306
        %v308 = vrot.slane %v299, %v307
        %v311 = vmul.f32 %v298, %v304
        %v312 = vmul.f32 %v297, %v308
        %313 = vrot.lane.b32.xlu0 %v283, 16
        %v314 = vpop.permute.xlu0 %313
        %315 = vrot.lane.b32.xlu0 %v287, 16
        %v316 = vpop.permute.xlu0 %315
        %vm317 = vcmp.lt.s32.totalorder %v295, 16
        %v318 = vsel %vm317, %v314, %v316
        %v319 = vsel %vm317, %v316, %v314
        %s320 = scalar_lea.vmem %s5, 1
        %v321 = vld [vmem:[%s320] ss:$8 sm:$0x3]
        %v323 = vlaneseq
        %v324 = vshrl.u32 %v323, 7
        %v325 = vsub.s32 0, %v324
        %v326 = vrot.slane %v321, %v325
        %v327 = vlaneseq
        %v328 = vshrl.u32 %v327, 7
        %v329 = vsub.s32 1, %v328
        %v330 = vrot.slane %v321, %v329
        %v333 = vmul.f32 %v319, %v326
        %v334 = vmul.f32 %v318, %v330
        %335 = vrot.lane.b32.xlu0 %v283, 15
        %v336 = vpop.permute.xlu0 %335
        %337 = vrot.lane.b32.xlu0 %v287, 15
        %v338 = vpop.permute.xlu0 %337
        %vm339 = vcmp.lt.s32.totalorder %v295, 15
        %v340 = vsel %vm339, %v336, %v338
        %v341 = vsel %vm339, %v338, %v336
        %s342 = scalar_lea.vmem %s5, 2
        %v343 = vld [vmem:[%s342] ss:$8 sm:$0x3]
        %v345 = vlaneseq
        %v346 = vshrl.u32 %v345, 7
        %v347 = vsub.s32 0, %v346
        %v348 = vrot.slane %v343, %v347
        %v349 = vlaneseq
        %v350 = vshrl.u32 %v349, 7
        %v351 = vsub.s32 1, %v350
        %v352 = vrot.slane %v343, %v351
        %v355 = vmul.f32 %v341, %v348
        %v356 = vmul.f32 %v340, %v352
        %357 = vrot.lane.b32.xlu0 %v283, 1
        %v358 = vpop.permute.xlu0 %357
        %359 = vrot.lane.b32.xlu0 %v287, 1
        %v360 = vpop.permute.xlu0 %359
        %vm361 = vcmp.lt.s32.totalorder %v295, 1
        %v362 = vsel %vm361, %v358, %v360
        %v363 = vsel %vm361, %v360, %v358
        %s364 = scalar_lea.vmem %s5, 3
        %v365 = vld [vmem:[%s364] ss:$8 sm:$0x3]
        %v367 = vlaneseq
        %v368 = vshrl.u32 %v367, 7
        %v369 = vsub.s32 0, %v368
        %v370 = vrot.slane %v365, %v369
        %v371 = vlaneseq
        %v372 = vshrl.u32 %v371, 7
        %v373 = vsub.s32 1, %v372
        %v374 = vrot.slane %v365, %v373
        %v377 = vmul.f32 %v363, %v370
        %v378 = vmul.f32 %v362, %v374
        %379 = vrot.lane.b32.xlu0 %v283, 127
        %v380 = vpop.permute.xlu0 %379
        %381 = vrot.lane.b32.xlu0 %v287, 127
        %v382 = vpop.permute.xlu0 %381
        %vm383 = vcmp.lt.s32.totalorder %v295, 127
        %v384 = vsel %vm383, %v380, %v382
        %v385 = vsel %vm383, %v382, %v380
        %s386 = scalar_lea.vmem %s5, 5
        %v387 = vld [vmem:[%s386] ss:$8 sm:$0x3]
        %v389 = vlaneseq
        %v390 = vshrl.u32 %v389, 7
        %v391 = vsub.s32 0, %v390
        %v392 = vrot.slane %v387, %v391
        %v393 = vlaneseq
        %v394 = vshrl.u32 %v393, 7
        %v395 = vsub.s32 1, %v394
        %v396 = vrot.slane %v387, %v395
        %v399 = vmul.f32 %v384, %v392
        %v400 = vmul.f32 %v385, %v396
        %401 = vrot.lane.b32.xlu0 %v283, 113
        %v402 = vpop.permute.xlu0 %401
        %403 = vrot.lane.b32.xlu0 %v287, 113
        %v404 = vpop.permute.xlu0 %403
        %vm405 = vcmp.lt.s32.totalorder %v295, 113
        %v406 = vsel %vm405, %v402, %v404
        %v407 = vsel %vm405, %v404, %v402
        %s408 = scalar_lea.vmem %s5, 6
        %v409 = vld [vmem:[%s408] ss:$8 sm:$0x3]
        %v411 = vlaneseq
        %v412 = vshrl.u32 %v411, 7
        %v413 = vsub.s32 0, %v412
        %v414 = vrot.slane %v409, %v413
        %v415 = vlaneseq
        %v416 = vshrl.u32 %v415, 7
        %v417 = vsub.s32 1, %v416
        %v418 = vrot.slane %v409, %v417
        %v421 = vmul.f32 %v406, %v414
        %v422 = vmul.f32 %v407, %v418
        %423 = vrot.lane.b32.xlu0 %v283, 112
        %v424 = vpop.permute.xlu0 %423
        %425 = vrot.lane.b32.xlu0 %v287, 112
        %v426 = vpop.permute.xlu0 %425
        %vm427 = vcmp.lt.s32.totalorder %v295, 112
        %v428 = vsel %vm427, %v424, %v426
        %v429 = vsel %vm427, %v426, %v424
        %s430 = scalar_lea.vmem %s5, 7
        %v431 = vld [vmem:[%s430] ss:$8 sm:$0x3]
        %v433 = vlaneseq
        %v434 = vshrl.u32 %v433, 7
        %v435 = vsub.s32 0, %v434
        %v436 = vrot.slane %v431, %v435
        %v437 = vlaneseq
        %v438 = vshrl.u32 %v437, 7
        %v439 = vsub.s32 1, %v438
        %v440 = vrot.slane %v431, %v439
        %v443 = vmul.f32 %v428, %v436
        %v444 = vmul.f32 %v429, %v440
        %445 = vrot.lane.b32.xlu0 %v283, 111
        %v446 = vpop.permute.xlu0 %445
        %447 = vrot.lane.b32.xlu0 %v287, 111
        %v448 = vpop.permute.xlu0 %447
        %vm449 = vcmp.lt.s32.totalorder %v295, 111
        %v450 = vsel %vm449, %v446, %v448
        %v451 = vsel %vm449, %v448, %v446
        %s452 = scalar_lea.vmem %s5, 16
        %v453 = vld [vmem:[%s452] ss:$8 sm:$0x3]
        %v455 = vlaneseq
        %v456 = vshrl.u32 %v455, 7
        %v457 = vsub.s32 0, %v456
        %v458 = vrot.slane %v453, %v457
        %v459 = vlaneseq
        %v460 = vshrl.u32 %v459, 7
        %v461 = vsub.s32 1, %v460
        %v462 = vrot.slane %v453, %v461
        %v465 = vmul.f32 %v450, %v458
        %v466 = vmul.f32 %v451, %v462
        %v469 = vrot.slane %v333, 7
        %v470 = vrot.slane %v334, 7
        %v475 = vrot.slane %v355, 6
        %v476 = vrot.slane %v356, 6
        %v481 = vrot.slane %v377, 5
        %v482 = vrot.slane %v378, 5
        %v487 = vrot.slane %v399, 3
        %v488 = vrot.slane %v400, 3
        %v493 = vrot.slane %v421, 2
        %v494 = vrot.slane %v422, 2
        %v499 = vrot.slane %v443, 1
        %v500 = vrot.slane %v444, 1
        %vm503 = vcmask 1040384
        %v504 = vsel %vm503, %v311, %v469
        %v505 = vsel %vm503, %v312, %v470
        %vm506 = vcmask 1041408
        %v507 = vsel %vm506, %v504, %v475
        %v508 = vsel %vm506, %v505, %v476
        %vm509 = vcmask 1042432
        %v510 = vsel %vm509, %v507, %v481
        %v511 = vsel %vm509, %v508, %v482
        %vm512 = vcmask 1043456
        %v513 = vsel %vm512, %v510, %v283
        %v514 = vsel %vm512, %v511, %v287
        %vm515 = vcmask 1044480
        %v516 = vsel %vm515, %v513, %v487
        %v517 = vsel %vm515, %v514, %v488
        %vm518 = vcmask 1045504
        %v519 = vsel %vm518, %v516, %v493
        %v520 = vsel %vm518, %v517, %v494
        %vm521 = vcmask 1046528
        %v522 = vsel %vm521, %v519, %v499
        %v523 = vsel %vm521, %v520, %v500
        %v524 = vld [vmem:[%s1] sm:$0xf]
        %v525 = vld [vmem:[%s1 + $0x4] sm:$0xf]
        %v526 = vld [vmem:[%s1 + $0x8] sm:$0xf]
        %v527 = vld [vmem:[%s1 + $0xc] sm:$0xf]
        %v528 = vld [vmem:[%s1 + $0x10] sm:$0xf]
        %v529 = vld [vmem:[%s1 + $0x14] sm:$0xf]
        %v530 = vld [vmem:[%s1 + $0x18] sm:$0xf]
        %v531 = vld [vmem:[%s1 + $0x1c] sm:$0xf]
        %v532 = vpack.c.bf16 %v465, %v522
        %v533 = vpack.c.bf16 %v466, %v523
        %v534 = vld [vmem:[#allocation5] sm:$0xff]
        %v535 = vld [vmem:[#allocation5 + $0x8] sm:$0xff]
        %v536 = vld [vmem:[#allocation5 + $0x10] sm:$0xff]
        %v537 = vld [vmem:[#allocation5 + $0x18] sm:$0xff]
        %v538 = vld [vmem:[#allocation5 + $0x20] sm:$0xff]
        %v539 = vld [vmem:[#allocation5 + $0x28] sm:$0xff]
        %v540 = vld [vmem:[#allocation5 + $0x30] sm:$0xff]
        %v541 = vld [vmem:[#allocation5 + $0x38] sm:$0xff]
        %v542 = vld [vmem:[#allocation5 + $0x40] sm:$0xff]
        %v543 = vld [vmem:[#allocation5 + $0x48] sm:$0xff]
        %v544 = vld [vmem:[#allocation5 + $0x50] sm:$0xff]
        %v545 = vld [vmem:[#allocation5 + $0x58] sm:$0xff]
        %v546 = vld [vmem:[#allocation5 + $0x60] sm:$0xff]
        %v547 = vld [vmem:[#allocation5 + $0x68] sm:$0xff]
        %v548 = vld [vmem:[#allocation5 + $0x70] sm:$0xff]
        %v549 = vld [vmem:[#allocation5 + $0x78] sm:$0xff]
        %v558 = vunpack.c.l.b16 %v524
        %v559 = vunpack.c.l.b16 %v525
        %v560 = vunpack.c.l.b16 %v526
        %v561 = vunpack.c.l.b16 %v527
        %v562 = vunpack.c.l.b16 %v528
        %v563 = vunpack.c.l.b16 %v529
        %v564 = vunpack.c.l.b16 %v530
        %v565 = vunpack.c.l.b16 %v531
        %v566 = vpack.c.b16 %v559, %v558
        %v567 = vpack.c.b16 %v561, %v560
        %v568 = vpack.c.b16 %v563, %v562
        %v569 = vpack.c.b16 %v565, %v564
        %vm570 = vcmask 72704
        %v572 = vsel %vm570, %v566, 0
        %v575 = vsel %vm570, %v567, 0
        %v578 = vsel %vm570, %v568, 0
        %v581 = vsel %vm570, %v569, 0
        %v583 = vsel %vm512, 4294967295, 65535
        %v584 = vsel %vm515, %v583, 0
        %v586 = vand.u32 %v532, %v584
        %v589 = vand.u32 %v533, %v584
        %591 = vmatprep.subr.bf16.mxu0 %v589
        %592 = vmatpush1.bf16.msra.mxu0 %v586
        %593 = vmatprep.subr.bf16.mxu0 0
        %594 = vmatpush1.bf16.msra.mxu0 0
        %595 = vmatprep.subr.bf16.mxu0 0
        %596 = vmatpush1.bf16.msra.mxu0 0
        %597 = vmatprep.subr.bf16.mxu0 0
        %598 = vmatpush1.bf16.msra.mxu0 0
        %599 = vmatprep.subr.bf16.mxu0 0
        %600 = vmatpush1.bf16.msra.mxu0 0
        %601 = vmatprep.subr.bf16.mxu0 0
        %602 = vmatpush1.bf16.msra.mxu0 0
        %603 = vmatprep.subr.bf16.mxu0 0
        %604 = vmatpush1.bf16.msra.mxu0 0
        %605 = vmatprep.subr.bf16.mxu0 0
        %606 = vmatpush1.bf16.msra.mxu0 0
        %607 = vmatprep.subr.bf16.mxu0 0
        %608 = vmatpush1.bf16.msra.mxu0 0
        %609 = vmatprep.subr.bf16.mxu0 0
        %610 = vmatpush1.bf16.msra.mxu0 0
        %611 = vmatprep.subr.bf16.mxu0 0
        %612 = vmatpush1.bf16.msra.mxu0 0
        %613 = vmatprep.subr.bf16.mxu0 0
        %614 = vmatpush1.bf16.msra.mxu0 0
        %615 = vmatprep.subr.bf16.mxu0 0
        %616 = vmatpush1.bf16.msra.mxu0 0
        %617 = vmatprep.subr.bf16.mxu0 0
        %618 = vmatpush1.bf16.msra.mxu0 0
        %619 = vmatprep.subr.bf16.mxu0 0
        %620 = vmatpush1.bf16.msra.mxu0 0
        %621 = vmatprep.subr.bf16.mxu0 0
        %622 = vmatpush1.bf16.msra.mxu0 0
        %623 = vmatprep.mubr.bf16.mxu0 0
        %624 = vmatmul.mubr.bf16.gmra.mrb[0].mxu0 %v572
        %v625 = vpop.f32.mrb[0].mxu0
        %v626 = vadd.f32 %v534, %v625
        %v627 = vpop.f32.mrb[0].mxu0
        %v628 = vadd.f32 %v535, %v627
        %v629 = vpop.f32.mrb[0].mxu0
        %v630 = vadd.f32 %v536, %v629
        %v631 = vpop.f32.mrb[0].mxu0
        %v632 = vadd.f32 %v537, %v631
        %633 = vmatprep.mubr.bf16.mxu0 0
        %634 = vmatmul.mubr.bf16.gmra.mrb[0].mxu0 %v575
        %v635 = vpop.f32.mrb[0].mxu0
        %v636 = vadd.f32 %v538, %v635
        %v637 = vpop.f32.mrb[0].mxu0
        %v638 = vadd.f32 %v539, %v637
        %v639 = vpop.f32.mrb[0].mxu0
        %v640 = vadd.f32 %v540, %v639
        %v641 = vpop.f32.mrb[0].mxu0
        %v642 = vadd.f32 %v541, %v641
        %643 = vmatprep.mubr.bf16.mxu0 0
        %644 = vmatmul.mubr.bf16.gmra.mrb[0].mxu0 %v578
        %v645 = vpop.f32.mrb[0].mxu0
        %v646 = vadd.f32 %v542, %v645
        %v647 = vpop.f32.mrb[0].mxu0
        %v648 = vadd.f32 %v543, %v647
        %v649 = vpop.f32.mrb[0].mxu0
        %v650 = vadd.f32 %v544, %v649
        %v651 = vpop.f32.mrb[0].mxu0
        %v652 = vadd.f32 %v545, %v651
        %653 = vmatprep.mubr.bf16.mxu0 0
        %654 = vmatmul.mubr.bf16.gmra.mrb[0].mxu0 %v581
        %v655 = vpop.f32.mrb[0].mxu0
        %v656 = vadd.f32 %v546, %v655
        %v657 = vpop.f32.mrb[0].mxu0
        %v658 = vadd.f32 %v547, %v657
        %v659 = vpop.f32.mrb[0].mxu0
        %v660 = vadd.f32 %v548, %v659
        %v661 = vpop.f32.mrb[0].mxu0
        %v662 = vadd.f32 %v549, %v661
        %663 = vdwg.mxu0
        %v664 = vmax.f32 %v626, 0.0
        %v665 = vmax.f32 %v628, 0.0
        %v666 = vmax.f32 %v630, 0.0
        %v667 = vmax.f32 %v632, 0.0
        %v668 = vmax.f32 %v636, 0.0
        %v669 = vmax.f32 %v638, 0.0
        %v670 = vmax.f32 %v640, 0.0
        %v671 = vmax.f32 %v642, 0.0
        %v672 = vmax.f32 %v646, 0.0
        %v673 = vmax.f32 %v648, 0.0
        %v674 = vmax.f32 %v650, 0.0
        %v675 = vmax.f32 %v652, 0.0
        %v676 = vmax.f32 %v656, 0.0
        %v677 = vmax.f32 %v658, 0.0
        %v678 = vmax.f32 %v660, 0.0
        %v679 = vmax.f32 %v662, 0.0
        %680 = vst [vmem:[#allocation2] sm:$0xff] %v664
        %681 = vst [vmem:[#allocation2 + $0x8] sm:$0xff] %v665
        %682 = vst [vmem:[#allocation2 + $0x10] sm:$0xff] %v666
        %683 = vst [vmem:[#allocation2 + $0x18] sm:$0xff] %v667
        %684 = vst [vmem:[#allocation2 + $0x20] sm:$0xff] %v668
        %685 = vst [vmem:[#allocation2 + $0x28] sm:$0xff] %v669
        %686 = vst [vmem:[#allocation2 + $0x30] sm:$0xff] %v670
        %687 = vst [vmem:[#allocation2 + $0x38] sm:$0xff] %v671
        %688 = vst [vmem:[#allocation2 + $0x40] sm:$0xff] %v672
        %689 = vst [vmem:[#allocation2 + $0x48] sm:$0xff] %v673
        %690 = vst [vmem:[#allocation2 + $0x50] sm:$0xff] %v674
        %691 = vst [vmem:[#allocation2 + $0x58] sm:$0xff] %v675
        %692 = vst [vmem:[#allocation2 + $0x60] sm:$0xff] %v676
        %693 = vst [vmem:[#allocation2 + $0x68] sm:$0xff] %v677
        %694 = vst [vmem:[#allocation2 + $0x70] sm:$0xff] %v678
        %695 = vst [vmem:[#allocation2 + $0x78] sm:$0xff] %v679
        %v696 = vld [vmem:[#allocation2] sm:$0xff]
        %v697 = vld [vmem:[#allocation2 + $0x8] sm:$0xff]
        %v698 = vld [vmem:[#allocation2 + $0x10] sm:$0xff]
        %v699 = vld [vmem:[#allocation2 + $0x18] sm:$0xff]
        %v700 = vld [vmem:[#allocation2 + $0x20] sm:$0xff]
        %v701 = vld [vmem:[#allocation2 + $0x28] sm:$0xff]
        %v702 = vld [vmem:[#allocation2 + $0x30] sm:$0xff]
        %v703 = vld [vmem:[#allocation2 + $0x38] sm:$0xff]
        %v704 = vld [vmem:[#allocation2 + $0x40] sm:$0xff]
        %v705 = vld [vmem:[#allocation2 + $0x48] sm:$0xff]
        %v706 = vld [vmem:[#allocation2 + $0x50] sm:$0xff]
        %v707 = vld [vmem:[#allocation2 + $0x58] sm:$0xff]
        %v708 = vld [vmem:[#allocation2 + $0x60] sm:$0xff]
        %v709 = vld [vmem:[#allocation2 + $0x68] sm:$0xff]
        %v710 = vld [vmem:[#allocation2 + $0x70] sm:$0xff]
        %v711 = vld [vmem:[#allocation2 + $0x78] sm:$0xff]
        %712 = vrot.lane.b32.xlu0 %v696, 17
        %v713 = vpop.permute.xlu0 %712
        %714 = vrot.lane.b32.xlu0 %v698, 17
        %v715 = vpop.permute.xlu0 %714
        %716 = vrot.lane.b32.xlu0 %v700, 17
        %v717 = vpop.permute.xlu0 %716
        %718 = vrot.lane.b32.xlu0 %v702, 17
        %v719 = vpop.permute.xlu0 %718
        %720 = vrot.lane.b32.xlu0 %v704, 17
        %v721 = vpop.permute.xlu0 %720
        %722 = vrot.lane.b32.xlu0 %v706, 17
        %v723 = vpop.permute.xlu0 %722
        %724 = vrot.lane.b32.xlu0 %v708, 17
        %v725 = vpop.permute.xlu0 %724
        %726 = vrot.lane.b32.xlu0 %v710, 17
        %v727 = vpop.permute.xlu0 %726
        %728 = vrot.lane.b32.xlu0 %v697, 17
        %v729 = vpop.permute.xlu0 %728
        %730 = vrot.lane.b32.xlu0 %v699, 17
        %v731 = vpop.permute.xlu0 %730
        %732 = vrot.lane.b32.xlu0 %v701, 17
        %v733 = vpop.permute.xlu0 %732
        %734 = vrot.lane.b32.xlu0 %v703, 17
        %v735 = vpop.permute.xlu0 %734
        %736 = vrot.lane.b32.xlu0 %v705, 17
        %v737 = vpop.permute.xlu0 %736
        %738 = vrot.lane.b32.xlu0 %v707, 17
        %v739 = vpop.permute.xlu0 %738
        %740 = vrot.lane.b32.xlu0 %v709, 17
        %v741 = vpop.permute.xlu0 %740
        %742 = vrot.lane.b32.xlu0 %v711, 17
        %v743 = vpop.permute.xlu0 %742
        %v744 = vsel %vm296, %v713, %v729
        %v745 = vsel %vm296, %v715, %v731
        %v746 = vsel %vm296, %v717, %v733
        %v747 = vsel %vm296, %v719, %v735
        %v748 = vsel %vm296, %v721, %v737
        %v749 = vsel %vm296, %v723, %v739
        %v750 = vsel %vm296, %v725, %v741
        %v751 = vsel %vm296, %v727, %v743
        %v752 = vsel %vm296, %v729, %v713
        %v753 = vsel %vm296, %v731, %v715
        %v754 = vsel %vm296, %v733, %v717
        %v755 = vsel %vm296, %v735, %v719
        %v756 = vsel %vm296, %v737, %v721
        %v757 = vsel %vm296, %v739, %v723
        %v758 = vsel %vm296, %v741, %v725
        %v759 = vsel %vm296, %v743, %v727
        %v760 = vld [vmem:[%s5] ss:$8 sm:$0x3]
        %v762 = vlaneseq
        %v763 = vshrl.u32 %v762, 7
        %v764 = vsub.s32 0, %v763
        %v765 = vrot.slane %v760, %v764
        %v766 = vlaneseq
        %v767 = vshrl.u32 %v766, 7
        %v768 = vsub.s32 1, %v767
        %v769 = vrot.slane %v760, %v768
        %v772 = vmul.f32 %v752, %v765
        %v773 = vmul.f32 %v744, %v769
        %v774 = vmul.f32 %v753, %v765
        %v775 = vmul.f32 %v745, %v769
        %v776 = vmul.f32 %v754, %v765
        %v777 = vmul.f32 %v746, %v769
        %v778 = vmul.f32 %v755, %v765
        %v779 = vmul.f32 %v747, %v769
        %v780 = vmul.f32 %v756, %v765
        %v781 = vmul.f32 %v748, %v769
        %v782 = vmul.f32 %v757, %v765
        %v783 = vmul.f32 %v749, %v769
        %v784 = vmul.f32 %v758, %v765
        %v785 = vmul.f32 %v750, %v769
        %v786 = vmul.f32 %v759, %v765
        %v787 = vmul.f32 %v751, %v769
        %v788 = vpack.c.bf16 %v774, %v772
        %v789 = vpack.c.bf16 %v775, %v773
        %v790 = vpack.c.bf16 %v778, %v776
        %v791 = vpack.c.bf16 %v779, %v777
        %v792 = vpack.c.bf16 %v782, %v780
        %v793 = vpack.c.bf16 %v783, %v781
        %v794 = vpack.c.bf16 %v786, %v784
        %v795 = vpack.c.bf16 %v787, %v785
        %796 = vst [vmem:[#allocation3] sm:$0xff] %v788
        %797 = vst [vmem:[#allocation3 + $0x8] sm:$0xff] %v789
        %798 = vst [vmem:[#allocation3 + $0x10] sm:$0xff] %v790
        %799 = vst [vmem:[#allocation3 + $0x18] sm:$0xff] %v791
        %800 = vst [vmem:[#allocation3 + $0x20] sm:$0xff] %v792
        %801 = vst [vmem:[#allocation3 + $0x28] sm:$0xff] %v793
        %802 = vst [vmem:[#allocation3 + $0x30] sm:$0xff] %v794
        %803 = vst [vmem:[#allocation3 + $0x38] sm:$0xff] %v795
        %v804 = vld [vmem:[#allocation2] sm:$0xff]
        %v805 = vld [vmem:[#allocation2 + $0x8] sm:$0xff]
        %v806 = vld [vmem:[#allocation2 + $0x10] sm:$0xff]
        %v807 = vld [vmem:[#allocation2 + $0x18] sm:$0xff]
        %v808 = vld [vmem:[#allocation2 + $0x20] sm:$0xff]
        %v809 = vld [vmem:[#allocation2 + $0x28] sm:$0xff]
        %v810 = vld [vmem:[#allocation2 + $0x30] sm:$0xff]
        %v811 = vld [vmem:[#allocation2 + $0x38] sm:$0xff]
        %v812 = vld [vmem:[#allocation2 + $0x40] sm:$0xff]
        %v813 = vld [vmem:[#allocation2 + $0x48] sm:$0xff]
        %v814 = vld [vmem:[#allocation2 + $0x50] sm:$0xff]
        %v815 = vld [vmem:[#allocation2 + $0x58] sm:$0xff]
        %v816 = vld [vmem:[#allocation2 + $0x60] sm:$0xff]
        %v817 = vld [vmem:[#allocation2 + $0x68] sm:$0xff]
        %v818 = vld [vmem:[#allocation2 + $0x70] sm:$0xff]
        %v819 = vld [vmem:[#allocation2 + $0x78] sm:$0xff]
        %820 = vrot.lane.b32.xlu0 %v804, 16
        %v821 = vpop.permute.xlu0 %820
        %822 = vrot.lane.b32.xlu0 %v806, 16
        %v823 = vpop.permute.xlu0 %822
        %824 = vrot.lane.b32.xlu0 %v808, 16
        %v825 = vpop.permute.xlu0 %824
        %826 = vrot.lane.b32.xlu0 %v810, 16
        %v827 = vpop.permute.xlu0 %826
        %828 = vrot.lane.b32.xlu0 %v812, 16
        %v829 = vpop.permute.xlu0 %828
        %830 = vrot.lane.b32.xlu0 %v814, 16
        %v831 = vpop.permute.xlu0 %830
        %832 = vrot.lane.b32.xlu0 %v816, 16
        %v833 = vpop.permute.xlu0 %832
        %834 = vrot.lane.b32.xlu0 %v818, 16
        %v835 = vpop.permute.xlu0 %834
        %836 = vrot.lane.b32.xlu0 %v805, 16
        %v837 = vpop.permute.xlu0 %836
        %838 = vrot.lane.b32.xlu0 %v807, 16
        %v839 = vpop.permute.xlu0 %838
        %840 = vrot.lane.b32.xlu0 %v809, 16
        %v841 = vpop.permute.xlu0 %840
        %842 = vrot.lane.b32.xlu0 %v811, 16
        %v843 = vpop.permute.xlu0 %842
        %844 = vrot.lane.b32.xlu0 %v813, 16
        %v845 = vpop.permute.xlu0 %844
        %846 = vrot.lane.b32.xlu0 %v815, 16
        %v847 = vpop.permute.xlu0 %846
        %848 = vrot.lane.b32.xlu0 %v817, 16
        %v849 = vpop.permute.xlu0 %848
        %850 = vrot.lane.b32.xlu0 %v819, 16
        %v851 = vpop.permute.xlu0 %850
        %v852 = vsel %vm317, %v821, %v837
        %v853 = vsel %vm317, %v823, %v839
        %v854 = vsel %vm317, %v825, %v841
        %v855 = vsel %vm317, %v827, %v843
        %v856 = vsel %vm317, %v829, %v845
        %v857 = vsel %vm317, %v831, %v847
        %v858 = vsel %vm317, %v833, %v849
        %v859 = vsel %vm317, %v835, %v851
        %v860 = vsel %vm317, %v837, %v821
        %v861 = vsel %vm317, %v839, %v823
        %v862 = vsel %vm317, %v841, %v825
        %v863 = vsel %vm317, %v843, %v827
        %v864 = vsel %vm317, %v845, %v829
        %v865 = vsel %vm317, %v847, %v831
        %v866 = vsel %vm317, %v849, %v833
        %v867 = vsel %vm317, %v851, %v835
        %v868 = vld [vmem:[%s320] ss:$8 sm:$0x3]
        %v870 = vlaneseq
        %v871 = vshrl.u32 %v870, 7
        %v872 = vsub.s32 0, %v871
        %v873 = vrot.slane %v868, %v872
        %v874 = vlaneseq
        %v875 = vshrl.u32 %v874, 7
        %v876 = vsub.s32 1, %v875
        %v877 = vrot.slane %v868, %v876
        %v880 = vmul.f32 %v860, %v873
        %v881 = vmul.f32 %v852, %v877
        %v882 = vmul.f32 %v861, %v873
        %v883 = vmul.f32 %v853, %v877
        %v884 = vmul.f32 %v862, %v873
        %v885 = vmul.f32 %v854, %v877
        %v886 = vmul.f32 %v863, %v873
        %v887 = vmul.f32 %v855, %v877
        %v888 = vmul.f32 %v864, %v873
        %v889 = vmul.f32 %v856, %v877
        %v890 = vmul.f32 %v865, %v873
        %v891 = vmul.f32 %v857, %v877
        %v892 = vmul.f32 %v866, %v873
        %v893 = vmul.f32 %v858, %v877
        %v894 = vmul.f32 %v867, %v873
        %v895 = vmul.f32 %v859, %v877
        %v896 = vpack.c.bf16 %v882, %v880
        %v897 = vpack.c.bf16 %v883, %v881
        %v898 = vpack.c.bf16 %v886, %v884
        %v899 = vpack.c.bf16 %v887, %v885
        %v900 = vpack.c.bf16 %v890, %v888
        %v901 = vpack.c.bf16 %v891, %v889
        %v902 = vpack.c.bf16 %v894, %v892
        %v903 = vpack.c.bf16 %v895, %v893
        %904 = vst [vmem:[#allocation3 + $0x40] sm:$0xff] %v896
        %905 = vst [vmem:[#allocation3 + $0x48] sm:$0xff] %v897
        %906 = vst [vmem:[#allocation3 + $0x50] sm:$0xff] %v898
        %907 = vst [vmem:[#allocation3 + $0x58] sm:$0xff] %v899
        %908 = vst [vmem:[#allocation3 + $0x60] sm:$0xff] %v900
        %909 = vst [vmem:[#allocation3 + $0x68] sm:$0xff] %v901
        %910 = vst [vmem:[#allocation3 + $0x70] sm:$0xff] %v902
        %911 = vst [vmem:[#allocation3 + $0x78] sm:$0xff] %v903
        %v912 = vld [vmem:[#allocation2] sm:$0xff]
        %v913 = vld [vmem:[#allocation2 + $0x8] sm:$0xff]
        %v914 = vld [vmem:[#allocation2 + $0x10] sm:$0xff]
        %v915 = vld [vmem:[#allocation2 + $0x18] sm:$0xff]
        %v916 = vld [vmem:[#allocation2 + $0x20] sm:$0xff]
        %v917 = vld [vmem:[#allocation2 + $0x28] sm:$0xff]
        %v918 = vld [vmem:[#allocation2 + $0x30] sm:$0xff]
        %v919 = vld [vmem:[#allocation2 + $0x38] sm:$0xff]
        %v920 = vld [vmem:[#allocation2 + $0x40] sm:$0xff]
        %v921 = vld [vmem:[#allocation2 + $0x48] sm:$0xff]
        %v922 = vld [vmem:[#allocation2 + $0x50] sm:$0xff]
        %v923 = vld [vmem:[#allocation2 + $0x58] sm:$0xff]
        %v924 = vld [vmem:[#allocation2 + $0x60] sm:$0xff]
        %v925 = vld [vmem:[#allocation2 + $0x68] sm:$0xff]
        %v926 = vld [vmem:[#allocation2 + $0x70] sm:$0xff]
        %v927 = vld [vmem:[#allocation2 + $0x78] sm:$0xff]
        %928 = vrot.lane.b32.xlu0 %v912, 15
        %v929 = vpop.permute.xlu0 %928
        %930 = vrot.lane.b32.xlu0 %v914, 15
        %v931 = vpop.permute.xlu0 %930
        %932 = vrot.lane.b32.xlu0 %v916, 15
        %v933 = vpop.permute.xlu0 %932
        %934 = vrot.lane.b32.xlu0 %v918, 15
        %v935 = vpop.permute.xlu0 %934
        %936 = vrot.lane.b32.xlu0 %v920, 15
        %v937 = vpop.permute.xlu0 %936
        %938 = vrot.lane.b32.xlu0 %v922, 15
        %v939 = vpop.permute.xlu0 %938
        %940 = vrot.lane.b32.xlu0 %v924, 15
        %v941 = vpop.permute.xlu0 %940
        %942 = vrot.lane.b32.xlu0 %v926, 15
        %v943 = vpop.permute.xlu0 %942
        %944 = vrot.lane.b32.xlu0 %v913, 15
        %v945 = vpop.permute.xlu0 %944
        %946 = vrot.lane.b32.xlu0 %v915, 15
        %v947 = vpop.permute.xlu0 %946
        %948 = vrot.lane.b32.xlu0 %v917, 15
        %v949 = vpop.permute.xlu0 %948
        %950 = vrot.lane.b32.xlu0 %v919, 15
        %v951 = vpop.permute.xlu0 %950
        %952 = vrot.lane.b32.xlu0 %v921, 15
        %v953 = vpop.permute.xlu0 %952
        %954 = vrot.lane.b32.xlu0 %v923, 15
        %v955 = vpop.permute.xlu0 %954
        %956 = vrot.lane.b32.xlu0 %v925, 15
        %v957 = vpop.permute.xlu0 %956
        %958 = vrot.lane.b32.xlu0 %v927, 15
        %v959 = vpop.permute.xlu0 %958
        %v960 = vsel %vm339, %v929, %v945
        %v961 = vsel %vm339, %v931, %v947
        %v962 = vsel %vm339, %v933, %v949
        %v963 = vsel %vm339, %v935, %v951
        %v964 = vsel %vm339, %v937, %v953
        %v965 = vsel %vm339, %v939, %v955
        %v966 = vsel %vm339, %v941, %v957
        %v967 = vsel %vm339, %v943, %v959
        %v968 = vsel %vm339, %v945, %v929
        %v969 = vsel %vm339, %v947, %v931
        %v970 = vsel %vm339, %v949, %v933
        %v971 = vsel %vm339, %v951, %v935
        %v972 = vsel %vm339, %v953, %v937
        %v973 = vsel %vm339, %v955, %v939
        %v974 = vsel %vm339, %v957, %v941
        %v975 = vsel %vm339, %v959, %v943
        %v976 = vld [vmem:[%s342] ss:$8 sm:$0x3]
        %v978 = vlaneseq
        %v979 = vshrl.u32 %v978, 7
        %v980 = vsub.s32 0, %v979
        %v981 = vrot.slane %v976, %v980
        %v982 = vlaneseq
        %v983 = vshrl.u32 %v982, 7
        %v984 = vsub.s32 1, %v983
        %v985 = vrot.slane %v976, %v984
        %v988 = vmul.f32 %v968, %v981
        %v989 = vmul.f32 %v960, %v985
        %v990 = vmul.f32 %v969, %v981
        %v991 = vmul.f32 %v961, %v985
        %v992 = vmul.f32 %v970, %v981
        %v993 = vmul.f32 %v962, %v985
        %v994 = vmul.f32 %v971, %v981
        %v995 = vmul.f32 %v963, %v985
        %v996 = vmul.f32 %v972, %v981
        %v997 = vmul.f32 %v964, %v985
        %v998 = vmul.f32 %v973, %v981
        %v999 = vmul.f32 %v965, %v985
        %v1000 = vmul.f32 %v974, %v981
        %v1001 = vmul.f32 %v966, %v985
        %v1002 = vmul.f32 %v975, %v981
        %v1003 = vmul.f32 %v967, %v985
        %v1004 = vpack.c.bf16 %v990, %v988
        %v1005 = vpack.c.bf16 %v991, %v989
        %v1006 = vpack.c.bf16 %v994, %v992
        %v1007 = vpack.c.bf16 %v995, %v993
        %v1008 = vpack.c.bf16 %v998, %v996
        %v1009 = vpack.c.bf16 %v999, %v997
        %v1010 = vpack.c.bf16 %v1002, %v1000
        %v1011 = vpack.c.bf16 %v1003, %v1001
        %1012 = vst [vmem:[#allocation3 + $0x80] sm:$0xff] %v1004
        %1013 = vst [vmem:[#allocation3 + $0x88] sm:$0xff] %v1005
        %1014 = vst [vmem:[#allocation3 + $0x90] sm:$0xff] %v1006
        %1015 = vst [vmem:[#allocation3 + $0x98] sm:$0xff] %v1007
        %1016 = vst [vmem:[#allocation3 + $0xa0] sm:$0xff] %v1008
        %1017 = vst [vmem:[#allocation3 + $0xa8] sm:$0xff] %v1009
        %1018 = vst [vmem:[#allocation3 + $0xb0] sm:$0xff] %v1010
        %1019 = vst [vmem:[#allocation3 + $0xb8] sm:$0xff] %v1011
        %v1020 = vld [vmem:[#allocation8] sm:$0xff]
        %v1021 = vld [vmem:[#allocation8 + $0x14] sm:$0xff]
        %v1022 = vld [vmem:[#allocation8 + $0x28] sm:$0xff]
        %v1023 = vld [vmem:[#allocation8 + $0x3c] sm:$0xff]
        %v1024 = vld [vmem:[#allocation8 + $0x50] sm:$0xff]
        %v1025 = vld [vmem:[#allocation8 + $0x64] sm:$0xff]
        %v1026 = vld [vmem:[#allocation8 + $0x78] sm:$0xff]
        %v1027 = vld [vmem:[#allocation8 + $0x8c] sm:$0xff]
        %v1028 = vld [vmem:[#allocation3] sm:$0xff]
        %v1029 = vld [vmem:[#allocation3 + $0x8] sm:$0xff]
        %v1030 = vld [vmem:[#allocation3 + $0x10] sm:$0xff]
        %v1031 = vld [vmem:[#allocation3 + $0x18] sm:$0xff]
        %v1032 = vld [vmem:[#allocation3 + $0x20] sm:$0xff]
        %v1033 = vld [vmem:[#allocation3 + $0x28] sm:$0xff]
        %v1034 = vld [vmem:[#allocation3 + $0x30] sm:$0xff]
        %v1035 = vld [vmem:[#allocation3 + $0x38] sm:$0xff]
        %v1036 = vld [vmem:[#allocation3 + $0x40] sm:$0xff]
        %v1037 = vld [vmem:[#allocation3 + $0x48] sm:$0xff]
        %v1038 = vld [vmem:[#allocation3 + $0x50] sm:$0xff]
        %v1039 = vld [vmem:[#allocation3 + $0x58] sm:$0xff]
        %v1040 = vld [vmem:[#allocation3 + $0x60] sm:$0xff]
        %v1041 = vld [vmem:[#allocation3 + $0x68] sm:$0xff]
        %v1042 = vld [vmem:[#allocation3 + $0x70] sm:$0xff]
        %v1043 = vld [vmem:[#allocation3 + $0x78] sm:$0xff]
        %v1044 = vld [vmem:[#allocation3 + $0x80] sm:$0xff]
        %v1045 = vld [vmem:[#allocation3 + $0x88] sm:$0xff]
        %v1046 = vld [vmem:[#allocation3 + $0x90] sm:$0xff]
        %v1047 = vld [vmem:[#allocation3 + $0x98] sm:$0xff]
        %v1048 = vld [vmem:[#allocation3 + $0xa0] sm:$0xff]
        %v1049 = vld [vmem:[#allocation3 + $0xa8] sm:$0xff]
        %v1050 = vld [vmem:[#allocation3 + $0xb0] sm:$0xff]
        %v1051 = vld [vmem:[#allocation3 + $0xb8] sm:$0xff]
        %v1060 = vunpack.c.l.b16 %v1020
        %v1061 = vunpack.c.h.b16 %v1020
        %v1062 = vunpack.c.l.b16 %v1021
        %v1063 = vunpack.c.h.b16 %v1021
        %v1064 = vunpack.c.l.b16 %v1022
        %v1065 = vunpack.c.h.b16 %v1022
        %v1066 = vunpack.c.l.b16 %v1023
        %v1067 = vunpack.c.h.b16 %v1023
        %v1068 = vunpack.c.l.b16 %v1024
        %v1069 = vunpack.c.h.b16 %v1024
        %v1070 = vunpack.c.l.b16 %v1025
        %v1071 = vunpack.c.h.b16 %v1025
        %v1072 = vunpack.c.l.b16 %v1026
        %v1073 = vunpack.c.h.b16 %v1026
        %v1074 = vunpack.c.l.b16 %v1027
        %v1075 = vunpack.c.h.b16 %v1027
        %v1076 = vpack.c.b16 %v1062, %v1060
        %v1077 = vpack.c.b16 %v1063, %v1061
        %v1078 = vpack.c.b16 %v1066, %v1064
        %v1079 = vpack.c.b16 %v1067, %v1065
        %v1080 = vpack.c.b16 %v1070, %v1068
        %v1081 = vpack.c.b16 %v1071, %v1069
        %v1082 = vpack.c.b16 %v1074, %v1072
        %v1083 = vpack.c.b16 %v1075, %v1073
        %vm1088 = vcmask 523264
        %v1090 = vsel %vm1088, %v1077, 0
        %v1093 = vsel %vm1088, %v1079, 0
        %v1096 = vsel %vm1088, %v1081, 0
        %v1099 = vsel %vm1088, %v1083, 0
        %1101 = vmatprep.subr.bf16.mxu0 %v1029
        %1102 = vmatpush1.bf16.msra.mxu0 %v1028
        %1103 = vmatprep.subr.bf16.mxu0 %v1031
        %1104 = vmatpush1.bf16.msra.mxu0 %v1030
        %1105 = vmatprep.subr.bf16.mxu0 %v1033
        %1106 = vmatpush1.bf16.msra.mxu0 %v1032
        %1107 = vmatprep.subr.bf16.mxu0 %v1035
        %1108 = vmatpush1.bf16.msra.mxu0 %v1034
        %1109 = vmatprep.subr.bf16.mxu0 %v1037
        %1110 = vmatpush1.bf16.msra.mxu0 %v1036
        %1111 = vmatprep.subr.bf16.mxu0 %v1039
        %1112 = vmatpush1.bf16.msra.mxu0 %v1038
        %1113 = vmatprep.subr.bf16.mxu0 %v1041
        %1114 = vmatpush1.bf16.msra.mxu0 %v1040
        %1115 = vmatprep.subr.bf16.mxu0 %v1043
        %1116 = vmatpush1.bf16.msra.mxu0 %v1042
        %1117 = vmatprep.subr.bf16.mxu0 %v1045
        %1118 = vmatpush1.bf16.msra.mxu0 %v1044
        %1119 = vmatprep.subr.bf16.mxu0 %v1047
        %1120 = vmatpush1.bf16.msra.mxu0 %v1046
        %1121 = vmatprep.subr.bf16.mxu0 %v1049
        %1122 = vmatpush1.bf16.msra.mxu0 %v1048
        %1123 = vmatprep.subr.bf16.mxu0 %v1051
        %1124 = vmatpush1.bf16.msra.mxu0 %v1050
        %1125 = vmatprep.subr.bf16.mxu0 0
        %1126 = vmatpush1.bf16.msra.mxu0 0
        %1127 = vmatprep.subr.bf16.mxu0 0
        %1128 = vmatpush1.bf16.msra.mxu0 0
        %1129 = vmatprep.subr.bf16.mxu0 0
        %1130 = vmatpush1.bf16.msra.mxu0 0
        %1131 = vmatprep.subr.bf16.mxu0 0
        %1132 = vmatpush1.bf16.msra.mxu0 0
        %1133 = vmatprep.mubr.bf16.mxu0 %v1090
        %1134 = vmatmul.mubr.bf16.gmra.mrb[0].mxu0 %v1076
        %v1135 = vpop.f32.mrb[0].mxu0
        %v1136 = vadd.f32 0.0, %v1135
        %v1137 = vpop.f32.mrb[0].mxu0
        %v1138 = vadd.f32 0.0, %v1137
        %v1139 = vpop.f32.mrb[0].mxu0
        %v1140 = vadd.f32 0.0, %v1139
        %v1141 = vpop.f32.mrb[0].mxu0
        %v1142 = vadd.f32 0.0, %v1141
        %1143 = vmatprep.mubr.bf16.mxu0 %v1093
        %1144 = vmatmul.mubr.bf16.gmra.mrb[0].mxu0 %v1078
        %v1145 = vpop.f32.mrb[0].mxu0
        %v1146 = vadd.f32 0.0, %v1145
        %v1147 = vpop.f32.mrb[0].mxu0
        %v1148 = vadd.f32 0.0, %v1147
        %v1149 = vpop.f32.mrb[0].mxu0
        %v1150 = vadd.f32 0.0, %v1149
        %v1151 = vpop.f32.mrb[0].mxu0
        %v1152 = vadd.f32 0.0, %v1151
        %1153 = vmatprep.mubr.bf16.mxu0 %v1096
        %1154 = vmatmul.mubr.bf16.gmra.mrb[0].mxu0 %v1080
        %v1155 = vpop.f32.mrb[0].mxu0
        %v1156 = vadd.f32 0.0, %v1155
        %v1157 = vpop.f32.mrb[0].mxu0
        %v1158 = vadd.f32 0.0, %v1157
        %v1159 = vpop.f32.mrb[0].mxu0
        %v1160 = vadd.f32 0.0, %v1159
        %v1161 = vpop.f32.mrb[0].mxu0
        %v1162 = vadd.f32 0.0, %v1161
        %1163 = vmatprep.mubr.bf16.mxu0 %v1099
        %1164 = vmatmul.mubr.bf16.gmra.mrb[0].mxu0 %v1082
        %v1165 = vpop.f32.mrb[0].mxu0
        %v1166 = vadd.f32 0.0, %v1165
        %v1167 = vpop.f32.mrb[0].mxu0
        %v1168 = vadd.f32 0.0, %v1167
        %v1169 = vpop.f32.mrb[0].mxu0
        %v1170 = vadd.f32 0.0, %v1169
        %v1171 = vpop.f32.mrb[0].mxu0
        %v1172 = vadd.f32 0.0, %v1171
        %1173 = vdwg.mxu0
        %1174 = vst [vmem:[#allocation4] sm:$0xff] %v1136
        %1175 = vst [vmem:[#allocation4 + $0x8] sm:$0xff] %v1138
        %1176 = vst [vmem:[#allocation4 + $0x10] sm:$0xff] %v1140
        %1177 = vst [vmem:[#allocation4 + $0x18] sm:$0xff] %v1142
        %1178 = vst [vmem:[#allocation4 + $0x20] sm:$0xff] %v1146
        %1179 = vst [vmem:[#allocation4 + $0x28] sm:$0xff] %v1148
        %1180 = vst [vmem:[#allocation4 + $0x30] sm:$0xff] %v1150
        %1181 = vst [vmem:[#allocation4 + $0x38] sm:$0xff] %v1152
        %1182 = vst [vmem:[#allocation4 + $0x40] sm:$0xff] %v1156
        %1183 = vst [vmem:[#allocation4 + $0x48] sm:$0xff] %v1158
        %1184 = vst [vmem:[#allocation4 + $0x50] sm:$0xff] %v1160
        %1185 = vst [vmem:[#allocation4 + $0x58] sm:$0xff] %v1162
        %1186 = vst [vmem:[#allocation4 + $0x60] sm:$0xff] %v1166
        %1187 = vst [vmem:[#allocation4 + $0x68] sm:$0xff] %v1168
        %1188 = vst [vmem:[#allocation4 + $0x70] sm:$0xff] %v1170
        %1189 = vst [vmem:[#allocation4 + $0x78] sm:$0xff] %v1172
        %v1190 = vld [vmem:[#allocation2] sm:$0xff]
        %v1191 = vld [vmem:[#allocation2 + $0x8] sm:$0xff]
        %v1192 = vld [vmem:[#allocation2 + $0x10] sm:$0xff]
        %v1193 = vld [vmem:[#allocation2 + $0x18] sm:$0xff]
        %v1194 = vld [vmem:[#allocation2 + $0x20] sm:$0xff]
        %v1195 = vld [vmem:[#allocation2 + $0x28] sm:$0xff]
        %v1196 = vld [vmem:[#allocation2 + $0x30] sm:$0xff]
        %v1197 = vld [vmem:[#allocation2 + $0x38] sm:$0xff]
        %v1198 = vld [vmem:[#allocation2 + $0x40] sm:$0xff]
        %v1199 = vld [vmem:[#allocation2 + $0x48] sm:$0xff]
        %v1200 = vld [vmem:[#allocation2 + $0x50] sm:$0xff]
        %v1201 = vld [vmem:[#allocation2 + $0x58] sm:$0xff]
        %v1202 = vld [vmem:[#allocation2 + $0x60] sm:$0xff]
        %v1203 = vld [vmem:[#allocation2 + $0x68] sm:$0xff]
        %v1204 = vld [vmem:[#allocation2 + $0x70] sm:$0xff]
        %v1205 = vld [vmem:[#allocation2 + $0x78] sm:$0xff]
        %1206 = vrot.lane.b32.xlu0 %v1190, 1
        %v1207 = vpop.permute.xlu0 %1206
        %1208 = vrot.lane.b32.xlu0 %v1192, 1
        %v1209 = vpop.permute.xlu0 %1208
        %1210 = vrot.lane.b32.xlu0 %v1194, 1
        %v1211 = vpop.permute.xlu0 %1210
        %1212 = vrot.lane.b32.xlu0 %v1196, 1
        %v1213 = vpop.permute.xlu0 %1212
        %1214 = vrot.lane.b32.xlu0 %v1198, 1
        %v1215 = vpop.permute.xlu0 %1214
        %1216 = vrot.lane.b32.xlu0 %v1200, 1
        %v1217 = vpop.permute.xlu0 %1216
        %1218 = vrot.lane.b32.xlu0 %v1202, 1
        %v1219 = vpop.permute.xlu0 %1218
        %1220 = vrot.lane.b32.xlu0 %v1204, 1
        %v1221 = vpop.permute.xlu0 %1220
        %1222 = vrot.lane.b32.xlu0 %v1191, 1
        %v1223 = vpop.permute.xlu0 %1222
        %1224 = vrot.lane.b32.xlu0 %v1193, 1
        %v1225 = vpop.permute.xlu0 %1224
        %1226 = vrot.lane.b32.xlu0 %v1195, 1
        %v1227 = vpop.permute.xlu0 %1226
        %1228 = vrot.lane.b32.xlu0 %v1197, 1
        %v1229 = vpop.permute.xlu0 %1228
        %1230 = vrot.lane.b32.xlu0 %v1199, 1
        %v1231 = vpop.permute.xlu0 %1230
        %1232 = vrot.lane.b32.xlu0 %v1201, 1
        %v1233 = vpop.permute.xlu0 %1232
        %1234 = vrot.lane.b32.xlu0 %v1203, 1
        %v1235 = vpop.permute.xlu0 %1234
        %1236 = vrot.lane.b32.xlu0 %v1205, 1
        %v1237 = vpop.permute.xlu0 %1236
        %v1238 = vsel %vm361, %v1207, %v1223
        %v1239 = vsel %vm361, %v1209, %v1225
        %v1240 = vsel %vm361, %v1211, %v1227
        %v1241 = vsel %vm361, %v1213, %v1229
        %v1242 = vsel %vm361, %v1215, %v1231
        %v1243 = vsel %vm361, %v1217, %v1233
        %v1244 = vsel %vm361, %v1219, %v1235
        %v1245 = vsel %vm361, %v1221, %v1237
        %v1246 = vsel %vm361, %v1223, %v1207
        %v1247 = vsel %vm361, %v1225, %v1209
        %v1248 = vsel %vm361, %v1227, %v1211
        %v1249 = vsel %vm361, %v1229, %v1213
        %v1250 = vsel %vm361, %v1231, %v1215
        %v1251 = vsel %vm361, %v1233, %v1217
        %v1252 = vsel %vm361, %v1235, %v1219
        %v1253 = vsel %vm361, %v1237, %v1221
        %v1254 = vld [vmem:[%s364] ss:$8 sm:$0x3]
        %v1256 = vlaneseq
        %v1257 = vshrl.u32 %v1256, 7
        %v1258 = vsub.s32 0, %v1257
        %v1259 = vrot.slane %v1254, %v1258
        %v1260 = vlaneseq
        %v1261 = vshrl.u32 %v1260, 7
        %v1262 = vsub.s32 1, %v1261
        %v1263 = vrot.slane %v1254, %v1262
        %v1266 = vmul.f32 %v1246, %v1259
        %v1267 = vmul.f32 %v1238, %v1263
        %v1268 = vmul.f32 %v1247, %v1259
        %v1269 = vmul.f32 %v1239, %v1263
        %v1270 = vmul.f32 %v1248, %v1259
        %v1271 = vmul.f32 %v1240, %v1263
        %v1272 = vmul.f32 %v1249, %v1259
        %v1273 = vmul.f32 %v1241, %v1263
        %v1274 = vmul.f32 %v1250, %v1259
        %v1275 = vmul.f32 %v1242, %v1263
        %v1276 = vmul.f32 %v1251, %v1259
        %v1277 = vmul.f32 %v1243, %v1263
        %v1278 = vmul.f32 %v1252, %v1259
        %v1279 = vmul.f32 %v1244, %v1263
        %v1280 = vmul.f32 %v1253, %v1259
        %v1281 = vmul.f32 %v1245, %v1263
        %v1282 = vpack.c.bf16 %v1268, %v1266
        %v1283 = vpack.c.bf16 %v1269, %v1267
        %v1284 = vpack.c.bf16 %v1272, %v1270
        %v1285 = vpack.c.bf16 %v1273, %v1271
        %v1286 = vpack.c.bf16 %v1276, %v1274
        %v1287 = vpack.c.bf16 %v1277, %v1275
        %v1288 = vpack.c.bf16 %v1280, %v1278
        %v1289 = vpack.c.bf16 %v1281, %v1279
        %s1290 = scalar_lea.vmem [#allocation3], 192
        %1291 = vst [vmem:[%s1290] sm:$0xff] %v1282
        %1292 = vst [vmem:[%s1290 + $0x8] sm:$0xff] %v1283
        %1293 = vst [vmem:[%s1290 + $0x10] sm:$0xff] %v1284
        %1294 = vst [vmem:[%s1290 + $0x18] sm:$0xff] %v1285
        %1295 = vst [vmem:[%s1290 + $0x20] sm:$0xff] %v1286
        %1296 = vst [vmem:[%s1290 + $0x28] sm:$0xff] %v1287
        %1297 = vst [vmem:[%s1290 + $0x30] sm:$0xff] %v1288
        %1298 = vst [vmem:[%s1290 + $0x38] sm:$0xff] %v1289
        %v1299 = vld [vmem:[#allocation2] sm:$0xff]
        %v1300 = vld [vmem:[#allocation2 + $0x8] sm:$0xff]
        %v1301 = vld [vmem:[#allocation2 + $0x10] sm:$0xff]
        %v1302 = vld [vmem:[#allocation2 + $0x18] sm:$0xff]
        %v1303 = vld [vmem:[#allocation2 + $0x20] sm:$0xff]
        %v1304 = vld [vmem:[#allocation2 + $0x28] sm:$0xff]
        %v1305 = vld [vmem:[#allocation2 + $0x30] sm:$0xff]
        %v1306 = vld [vmem:[#allocation2 + $0x38] sm:$0xff]
        %v1307 = vld [vmem:[#allocation2 + $0x40] sm:$0xff]
        %v1308 = vld [vmem:[#allocation2 + $0x48] sm:$0xff]
        %v1309 = vld [vmem:[#allocation2 + $0x50] sm:$0xff]
        %v1310 = vld [vmem:[#allocation2 + $0x58] sm:$0xff]
        %v1311 = vld [vmem:[#allocation2 + $0x60] sm:$0xff]
        %v1312 = vld [vmem:[#allocation2 + $0x68] sm:$0xff]
        %v1313 = vld [vmem:[#allocation2 + $0x70] sm:$0xff]
        %v1314 = vld [vmem:[#allocation2 + $0x78] sm:$0xff]
        %v1315 = vpack.c.bf16 %v1301, %v1299
        %v1316 = vpack.c.bf16 %v1302, %v1300
        %v1317 = vpack.c.bf16 %v1305, %v1303
        %v1318 = vpack.c.bf16 %v1306, %v1304
        %v1319 = vpack.c.bf16 %v1309, %v1307
        %v1320 = vpack.c.bf16 %v1310, %v1308
        %v1321 = vpack.c.bf16 %v1313, %v1311
        %v1322 = vpack.c.bf16 %v1314, %v1312
        %1323 = vst [vmem:[%s1290 + $0x40] sm:$0xff] %v1315
        %1324 = vst [vmem:[%s1290 + $0x48] sm:$0xff] %v1316
        %1325 = vst [vmem:[%s1290 + $0x50] sm:$0xff] %v1317
        %1326 = vst [vmem:[%s1290 + $0x58] sm:$0xff] %v1318
        %1327 = vst [vmem:[%s1290 + $0x60] sm:$0xff] %v1319
        %1328 = vst [vmem:[%s1290 + $0x68] sm:$0xff] %v1320
        %1329 = vst [vmem:[%s1290 + $0x70] sm:$0xff] %v1321
        %1330 = vst [vmem:[%s1290 + $0x78] sm:$0xff] %v1322
        %v1331 = vld [vmem:[#allocation2] sm:$0xff]
        %v1332 = vld [vmem:[#allocation2 + $0x8] sm:$0xff]
        %v1333 = vld [vmem:[#allocation2 + $0x10] sm:$0xff]
        %v1334 = vld [vmem:[#allocation2 + $0x18] sm:$0xff]
        %v1335 = vld [vmem:[#allocation2 + $0x20] sm:$0xff]
        %v1336 = vld [vmem:[#allocation2 + $0x28] sm:$0xff]
        %v1337 = vld [vmem:[#allocation2 + $0x30] sm:$0xff]
        %v1338 = vld [vmem:[#allocation2 + $0x38] sm:$0xff]
        %v1339 = vld [vmem:[#allocation2 + $0x40] sm:$0xff]
        %v1340 = vld [vmem:[#allocation2 + $0x48] sm:$0xff]
        %v1341 = vld [vmem:[#allocation2 + $0x50] sm:$0xff]
        %v1342 = vld [vmem:[#allocation2 + $0x58] sm:$0xff]
        %v1343 = vld [vmem:[#allocation2 + $0x60] sm:$0xff]
        %v1344 = vld [vmem:[#allocation2 + $0x68] sm:$0xff]
        %v1345 = vld [vmem:[#allocation2 + $0x70] sm:$0xff]
        %v1346 = vld [vmem:[#allocation2 + $0x78] sm:$0xff]
        %1347 = vrot.lane.b32.xlu0 %v1331, 127
        %v1348 = vpop.permute.xlu0 %1347
        %1349 = vrot.lane.b32.xlu0 %v1333, 127
        %v1350 = vpop.permute.xlu0 %1349
        %1351 = vrot.lane.b32.xlu0 %v1335, 127
        %v1352 = vpop.permute.xlu0 %1351
        %1353 = vrot.lane.b32.xlu0 %v1337, 127
        %v1354 = vpop.permute.xlu0 %1353
        %1355 = vrot.lane.b32.xlu0 %v1339, 127
        %v1356 = vpop.permute.xlu0 %1355
        %1357 = vrot.lane.b32.xlu0 %v1341, 127
        %v1358 = vpop.permute.xlu0 %1357
        %1359 = vrot.lane.b32.xlu0 %v1343, 127
        %v1360 = vpop.permute.xlu0 %1359
        %1361 = vrot.lane.b32.xlu0 %v1345, 127
        %v1362 = vpop.permute.xlu0 %1361
        %1363 = vrot.lane.b32.xlu0 %v1332, 127
        %v1364 = vpop.permute.xlu0 %1363
        %1365 = vrot.lane.b32.xlu0 %v1334, 127
        %v1366 = vpop.permute.xlu0 %1365
        %1367 = vrot.lane.b32.xlu0 %v1336, 127
        %v1368 = vpop.permute.xlu0 %1367
        %1369 = vrot.lane.b32.xlu0 %v1338, 127
        %v1370 = vpop.permute.xlu0 %1369
        %1371 = vrot.lane.b32.xlu0 %v1340, 127
        %v1372 = vpop.permute.xlu0 %1371
        %1373 = vrot.lane.b32.xlu0 %v1342, 127
        %v1374 = vpop.permute.xlu0 %1373
        %1375 = vrot.lane.b32.xlu0 %v1344, 127
        %v1376 = vpop.permute.xlu0 %1375
        %1377 = vrot.lane.b32.xlu0 %v1346, 127
        %v1378 = vpop.permute.xlu0 %1377
        %v1379 = vsel %vm383, %v1348, %v1364
        %v1380 = vsel %vm383, %v1350, %v1366
        %v1381 = vsel %vm383, %v1352, %v1368
        %v1382 = vsel %vm383, %v1354, %v1370
        %v1383 = vsel %vm383, %v1356, %v1372
        %v1384 = vsel %vm383, %v1358, %v1374
        %v1385 = vsel %vm383, %v1360, %v1376
        %v1386 = vsel %vm383, %v1362, %v1378
        %v1387 = vsel %vm383, %v1364, %v1348
        %v1388 = vsel %vm383, %v1366, %v1350
        %v1389 = vsel %vm383, %v1368, %v1352
        %v1390 = vsel %vm383, %v1370, %v1354
        %v1391 = vsel %vm383, %v1372, %v1356
        %v1392 = vsel %vm383, %v1374, %v1358
        %v1393 = vsel %vm383, %v1376, %v1360
        %v1394 = vsel %vm383, %v1378, %v1362
        %v1395 = vld [vmem:[%s386] ss:$8 sm:$0x3]
        %v1397 = vlaneseq
        %v1398 = vshrl.u32 %v1397, 7
        %v1399 = vsub.s32 0, %v1398
        %v1400 = vrot.slane %v1395, %v1399
        %v1401 = vlaneseq
        %v1402 = vshrl.u32 %v1401, 7
        %v1403 = vsub.s32 1, %v1402
        %v1404 = vrot.slane %v1395, %v1403
        %v1407 = vmul.f32 %v1379, %v1400
        %v1408 = vmul.f32 %v1387, %v1404
        %v1409 = vmul.f32 %v1380, %v1400
        %v1410 = vmul.f32 %v1388, %v1404
        %v1411 = vmul.f32 %v1381, %v1400
        %v1412 = vmul.f32 %v1389, %v1404
        %v1413 = vmul.f32 %v1382, %v1400
        %v1414 = vmul.f32 %v1390, %v1404
        %v1415 = vmul.f32 %v1383, %v1400
        %v1416 = vmul.f32 %v1391, %v1404
        %v1417 = vmul.f32 %v1384, %v1400
        %v1418 = vmul.f32 %v1392, %v1404
        %v1419 = vmul.f32 %v1385, %v1400
        %v1420 = vmul.f32 %v1393, %v1404
        %v1421 = vmul.f32 %v1386, %v1400
        %v1422 = vmul.f32 %v1394, %v1404
        %v1423 = vpack.c.bf16 %v1409, %v1407
        %v1424 = vpack.c.bf16 %v1410, %v1408
        %v1425 = vpack.c.bf16 %v1413, %v1411
        %v1426 = vpack.c.bf16 %v1414, %v1412
        %v1427 = vpack.c.bf16 %v1417, %v1415
        %v1428 = vpack.c.bf16 %v1418, %v1416
        %v1429 = vpack.c.bf16 %v1421, %v1419
        %v1430 = vpack.c.bf16 %v1422, %v1420
        %1431 = vst [vmem:[%s1290 + $0x80] sm:$0xff] %v1423
        %1432 = vst [vmem:[%s1290 + $0x88] sm:$0xff] %v1424
        %1433 = vst [vmem:[%s1290 + $0x90] sm:$0xff] %v1425
        %1434 = vst [vmem:[%s1290 + $0x98] sm:$0xff] %v1426
        %1435 = vst [vmem:[%s1290 + $0xa0] sm:$0xff] %v1427
        %1436 = vst [vmem:[%s1290 + $0xa8] sm:$0xff] %v1428
        %1437 = vst [vmem:[%s1290 + $0xb0] sm:$0xff] %v1429
        %1438 = vst [vmem:[%s1290 + $0xb8] sm:$0xff] %v1430
        %v1439 = vld [vmem:[#allocation8 + $0x4] sm:$0xff]
        %v1440 = vld [vmem:[#allocation8 + $0x18] sm:$0xff]
        %v1441 = vld [vmem:[#allocation8 + $0x2c] sm:$0xff]
        %v1442 = vld [vmem:[#allocation8 + $0x40] sm:$0xff]
        %v1443 = vld [vmem:[#allocation8 + $0x54] sm:$0xff]
        %v1444 = vld [vmem:[#allocation8 + $0x68] sm:$0xff]
        %v1445 = vld [vmem:[#allocation8 + $0x7c] sm:$0xff]
        %v1446 = vld [vmem:[#allocation8 + $0x90] sm:$0xff]
        %v1447 = vld [vmem:[%s1290] sm:$0xff]
        %v1448 = vld [vmem:[%s1290 + $0x8] sm:$0xff]
        %v1449 = vld [vmem:[%s1290 + $0x10] sm:$0xff]
        %v1450 = vld [vmem:[%s1290 + $0x18] sm:$0xff]
        %v1451 = vld [vmem:[%s1290 + $0x20] sm:$0xff]
        %v1452 = vld [vmem:[%s1290 + $0x28] sm:$0xff]
        %v1453 = vld [vmem:[%s1290 + $0x30] sm:$0xff]
        %v1454 = vld [vmem:[%s1290 + $0x38] sm:$0xff]
        %v1455 = vld [vmem:[%s1290 + $0x40] sm:$0xff]
        %v1456 = vld [vmem:[%s1290 + $0x48] sm:$0xff]
        %v1457 = vld [vmem:[%s1290 + $0x50] sm:$0xff]
        %v1458 = vld [vmem:[%s1290 + $0x58] sm:$0xff]
        %v1459 = vld [vmem:[%s1290 + $0x60] sm:$0xff]
        %v1460 = vld [vmem:[%s1290 + $0x68] sm:$0xff]
        %v1461 = vld [vmem:[%s1290 + $0x70] sm:$0xff]
        %v1462 = vld [vmem:[%s1290 + $0x78] sm:$0xff]
        %v1463 = vld [vmem:[%s1290 + $0x80] sm:$0xff]
        %v1464 = vld [vmem:[%s1290 + $0x88] sm:$0xff]
        %v1465 = vld [vmem:[%s1290 + $0x90] sm:$0xff]
        %v1466 = vld [vmem:[%s1290 + $0x98] sm:$0xff]
        %v1467 = vld [vmem:[%s1290 + $0xa0] sm:$0xff]
        %v1468 = vld [vmem:[%s1290 + $0xa8] sm:$0xff]
        %v1469 = vld [vmem:[%s1290 + $0xb0] sm:$0xff]
        %v1470 = vld [vmem:[%s1290 + $0xb8] sm:$0xff]
        %v1479 = vunpack.c.l.b16 %v1439
        %v1480 = vunpack.c.h.b16 %v1439
        %v1481 = vunpack.c.l.b16 %v1440
        %v1482 = vunpack.c.h.b16 %v1440
        %v1483 = vunpack.c.l.b16 %v1441
        %v1484 = vunpack.c.h.b16 %v1441
        %v1485 = vunpack.c.l.b16 %v1442
        %v1486 = vunpack.c.h.b16 %v1442
        %v1487 = vunpack.c.l.b16 %v1443
        %v1488 = vunpack.c.h.b16 %v1443
        %v1489 = vunpack.c.l.b16 %v1444
        %v1490 = vunpack.c.h.b16 %v1444
        %v1491 = vunpack.c.l.b16 %v1445
        %v1492 = vunpack.c.h.b16 %v1445
        %v1493 = vunpack.c.l.b16 %v1446
        %v1494 = vunpack.c.h.b16 %v1446
        %v1495 = vpack.c.b16 %v1481, %v1479
        %v1496 = vpack.c.b16 %v1482, %v1480
        %v1497 = vpack.c.b16 %v1485, %v1483
        %v1498 = vpack.c.b16 %v1486, %v1484
        %v1499 = vpack.c.b16 %v1489, %v1487
        %v1500 = vpack.c.b16 %v1490, %v1488
        %v1501 = vpack.c.b16 %v1493, %v1491
        %v1502 = vpack.c.b16 %v1494, %v1492
        %1503 = vrot.lane.b32.xlu0 %v1495, 64
        %v1504 = vpop.permute.xlu0 %1503
        %1505 = vrot.lane.b32.xlu0 %v1496, 64
        %v1506 = vpop.permute.xlu0 %1505
        %1507 = vrot.lane.b32.xlu0 %v1497, 64
        %v1508 = vpop.permute.xlu0 %1507
        %1509 = vrot.lane.b32.xlu0 %v1498, 64
        %v1510 = vpop.permute.xlu0 %1509
        %1511 = vrot.lane.b32.xlu0 %v1499, 64
        %v1512 = vpop.permute.xlu0 %1511
        %1513 = vrot.lane.b32.xlu0 %v1500, 64
        %v1514 = vpop.permute.xlu0 %1513
        %1515 = vrot.lane.b32.xlu0 %v1501, 64
        %v1516 = vpop.permute.xlu0 %1515
        %1517 = vrot.lane.b32.xlu0 %v1502, 64
        %v1518 = vpop.permute.xlu0 %1517
        %vm1519 = vcmask 523264
        %v1520 = vsel %vm1519, %v1504, %v1506
        %v1521 = vsel %vm1519, %v1508, %v1510
        %v1522 = vsel %vm1519, %v1512, %v1514
        %v1523 = vsel %vm1519, %v1516, %v1518
        %v1529 = vsel %vm1088, %v1506, 0
        %v1532 = vsel %vm1088, %v1510, 0
        %v1535 = vsel %vm1088, %v1514, 0
        %v1538 = vsel %vm1088, %v1518, 0
        %1540 = vmatprep.subr.bf16.mxu0 %v1448
        %1541 = vmatpush1.bf16.msra.mxu0 %v1447
        %1542 = vmatprep.subr.bf16.mxu0 %v1450
        %1543 = vmatpush1.bf16.msra.mxu0 %v1449
        %1544 = vmatprep.subr.bf16.mxu0 %v1452
        %1545 = vmatpush1.bf16.msra.mxu0 %v1451
        %1546 = vmatprep.subr.bf16.mxu0 %v1454
        %1547 = vmatpush1.bf16.msra.mxu0 %v1453
        %1548 = vmatprep.subr.bf16.mxu0 %v1456
        %1549 = vmatpush1.bf16.msra.mxu0 %v1455
        %1550 = vmatprep.subr.bf16.mxu0 %v1458
        %1551 = vmatpush1.bf16.msra.mxu0 %v1457
        %1552 = vmatprep.subr.bf16.mxu0 %v1460
        %1553 = vmatpush1.bf16.msra.mxu0 %v1459
        %1554 = vmatprep.subr.bf16.mxu0 %v1462
        %1555 = vmatpush1.bf16.msra.mxu0 %v1461
        %1556 = vmatprep.subr.bf16.mxu0 %v1464
        %1557 = vmatpush1.bf16.msra.mxu0 %v1463
        %1558 = vmatprep.subr.bf16.mxu0 %v1466
        %1559 = vmatpush1.bf16.msra.mxu0 %v1465
        %1560 = vmatprep.subr.bf16.mxu0 %v1468
        %1561 = vmatpush1.bf16.msra.mxu0 %v1467
        %1562 = vmatprep.subr.bf16.mxu0 %v1470
        %1563 = vmatpush1.bf16.msra.mxu0 %v1469
        %1564 = vmatprep.subr.bf16.mxu0 0
        %1565 = vmatpush1.bf16.msra.mxu0 0
        %1566 = vmatprep.subr.bf16.mxu0 0
        %1567 = vmatpush1.bf16.msra.mxu0 0
        %1568 = vmatprep.subr.bf16.mxu0 0
        %1569 = vmatpush1.bf16.msra.mxu0 0
        %1570 = vmatprep.subr.bf16.mxu0 0
        %1571 = vmatpush1.bf16.msra.mxu0 0
        %1572 = vmatprep.mubr.bf16.mxu0 %v1529
        %1573 = vmatmul.mubr.bf16.gmra.mrb[0].mxu0 %v1520
        %v1574 = vpop.f32.mrb[0].mxu0
        %v1575 = vadd.f32 0.0, %v1574
        %v1576 = vpop.f32.mrb[0].mxu0
        %v1577 = vadd.f32 0.0, %v1576
        %v1578 = vpop.f32.mrb[0].mxu0
        %v1579 = vadd.f32 0.0, %v1578
        %v1580 = vpop.f32.mrb[0].mxu0
        %v1581 = vadd.f32 0.0, %v1580
        %1582 = vmatprep.mubr.bf16.mxu0 %v1532
        %1583 = vmatmul.mubr.bf16.gmra.mrb[0].mxu0 %v1521
        %v1584 = vpop.f32.mrb[0].mxu0
        %v1585 = vadd.f32 0.0, %v1584
        %v1586 = vpop.f32.mrb[0].mxu0
        %v1587 = vadd.f32 0.0, %v1586
        %v1588 = vpop.f32.mrb[0].mxu0
        %v1589 = vadd.f32 0.0, %v1588
        %v1590 = vpop.f32.mrb[0].mxu0
        %v1591 = vadd.f32 0.0, %v1590
        %1592 = vmatprep.mubr.bf16.mxu0 %v1535
        %1593 = vmatmul.mubr.bf16.gmra.mrb[0].mxu0 %v1522
        %v1594 = vpop.f32.mrb[0].mxu0
        %v1595 = vadd.f32 0.0, %v1594
        %v1596 = vpop.f32.mrb[0].mxu0
        %v1597 = vadd.f32 0.0, %v1596
        %v1598 = vpop.f32.mrb[0].mxu0
        %v1599 = vadd.f32 0.0, %v1598
        %v1600 = vpop.f32.mrb[0].mxu0
        %v1601 = vadd.f32 0.0, %v1600
        %1602 = vmatprep.mubr.bf16.mxu0 %v1538
        %1603 = vmatmul.mubr.bf16.gmra.mrb[0].mxu0 %v1523
        %v1604 = vpop.f32.mrb[0].mxu0
        %v1605 = vadd.f32 0.0, %v1604
        %v1606 = vpop.f32.mrb[0].mxu0
        %v1607 = vadd.f32 0.0, %v1606
        %v1608 = vpop.f32.mrb[0].mxu0
        %v1609 = vadd.f32 0.0, %v1608
        %v1610 = vpop.f32.mrb[0].mxu0
        %v1611 = vadd.f32 0.0, %v1610
        %1612 = vdwg.mxu0
        %v1613 = vld [vmem:[#allocation4] sm:$0xff]
        %v1614 = vld [vmem:[#allocation4 + $0x8] sm:$0xff]
        %v1615 = vld [vmem:[#allocation4 + $0x10] sm:$0xff]
        %v1616 = vld [vmem:[#allocation4 + $0x18] sm:$0xff]
        %v1617 = vld [vmem:[#allocation4 + $0x20] sm:$0xff]
        %v1618 = vld [vmem:[#allocation4 + $0x28] sm:$0xff]
        %v1619 = vld [vmem:[#allocation4 + $0x30] sm:$0xff]
        %v1620 = vld [vmem:[#allocation4 + $0x38] sm:$0xff]
        %v1621 = vld [vmem:[#allocation4 + $0x40] sm:$0xff]
        %v1622 = vld [vmem:[#allocation4 + $0x48] sm:$0xff]
        %v1623 = vld [vmem:[#allocation4 + $0x50] sm:$0xff]
        %v1624 = vld [vmem:[#allocation4 + $0x58] sm:$0xff]
        %v1625 = vld [vmem:[#allocation4 + $0x60] sm:$0xff]
        %v1626 = vld [vmem:[#allocation4 + $0x68] sm:$0xff]
        %v1627 = vld [vmem:[#allocation4 + $0x70] sm:$0xff]
        %v1628 = vld [vmem:[#allocation4 + $0x78] sm:$0xff]
        %v1629 = vadd.f32 %v1613, %v1575
        %v1630 = vadd.f32 %v1614, %v1577
        %v1631 = vadd.f32 %v1615, %v1579
        %v1632 = vadd.f32 %v1616, %v1581
        %v1633 = vadd.f32 %v1617, %v1585
        %v1634 = vadd.f32 %v1618, %v1587
        %v1635 = vadd.f32 %v1619, %v1589
        %v1636 = vadd.f32 %v1620, %v1591
        %v1637 = vadd.f32 %v1621, %v1595
        %v1638 = vadd.f32 %v1622, %v1597
        %v1639 = vadd.f32 %v1623, %v1599
        %v1640 = vadd.f32 %v1624, %v1601
        %v1641 = vadd.f32 %v1625, %v1605
        %v1642 = vadd.f32 %v1626, %v1607
        %v1643 = vadd.f32 %v1627, %v1609
        %v1644 = vadd.f32 %v1628, %v1611
        %1645 = vst [vmem:[#allocation4] sm:$0xff] %v1629
        %1646 = vst [vmem:[#allocation4 + $0x8] sm:$0xff] %v1630
        %1647 = vst [vmem:[#allocation4 + $0x10] sm:$0xff] %v1631
        %1648 = vst [vmem:[#allocation4 + $0x18] sm:$0xff] %v1632
        %1649 = vst [vmem:[#allocation4 + $0x20] sm:$0xff] %v1633
        %1650 = vst [vmem:[#allocation4 + $0x28] sm:$0xff] %v1634
        %1651 = vst [vmem:[#allocation4 + $0x30] sm:$0xff] %v1635
        %1652 = vst [vmem:[#allocation4 + $0x38] sm:$0xff] %v1636
        %1653 = vst [vmem:[#allocation4 + $0x40] sm:$0xff] %v1637
        %1654 = vst [vmem:[#allocation4 + $0x48] sm:$0xff] %v1638
        %1655 = vst [vmem:[#allocation4 + $0x50] sm:$0xff] %v1639
        %1656 = vst [vmem:[#allocation4 + $0x58] sm:$0xff] %v1640
        %1657 = vst [vmem:[#allocation4 + $0x60] sm:$0xff] %v1641
        %1658 = vst [vmem:[#allocation4 + $0x68] sm:$0xff] %v1642
        %1659 = vst [vmem:[#allocation4 + $0x70] sm:$0xff] %v1643
        %1660 = vst [vmem:[#allocation4 + $0x78] sm:$0xff] %v1644
        %v1661 = vld [vmem:[#allocation2] sm:$0xff]
        %v1662 = vld [vmem:[#allocation2 + $0x8] sm:$0xff]
        %v1663 = vld [vmem:[#allocation2 + $0x10] sm:$0xff]
        %v1664 = vld [vmem:[#allocation2 + $0x18] sm:$0xff]
        %v1665 = vld [vmem:[#allocation2 + $0x20] sm:$0xff]
        %v1666 = vld [vmem:[#allocation2 + $0x28] sm:$0xff]
        %v1667 = vld [vmem:[#allocation2 + $0x30] sm:$0xff]
        %v1668 = vld [vmem:[#allocation2 + $0x38] sm:$0xff]
        %v1669 = vld [vmem:[#allocation2 + $0x40] sm:$0xff]
        %v1670 = vld [vmem:[#allocation2 + $0x48] sm:$0xff]
        %v1671 = vld [vmem:[#allocation2 + $0x50] sm:$0xff]
        %v1672 = vld [vmem:[#allocation2 + $0x58] sm:$0xff]
        %v1673 = vld [vmem:[#allocation2 + $0x60] sm:$0xff]
        %v1674 = vld [vmem:[#allocation2 + $0x68] sm:$0xff]
        %v1675 = vld [vmem:[#allocation2 + $0x70] sm:$0xff]
        %v1676 = vld [vmem:[#allocation2 + $0x78] sm:$0xff]
        %1677 = vrot.lane.b32.xlu0 %v1661, 113
        %v1678 = vpop.permute.xlu0 %1677
        %1679 = vrot.lane.b32.xlu0 %v1663, 113
        %v1680 = vpop.permute.xlu0 %1679
        %1681 = vrot.lane.b32.xlu0 %v1665, 113
        %v1682 = vpop.permute.xlu0 %1681
        %1683 = vrot.lane.b32.xlu0 %v1667, 113
        %v1684 = vpop.permute.xlu0 %1683
        %1685 = vrot.lane.b32.xlu0 %v1669, 113
        %v1686 = vpop.permute.xlu0 %1685
        %1687 = vrot.lane.b32.xlu0 %v1671, 113
        %v1688 = vpop.permute.xlu0 %1687
        %1689 = vrot.lane.b32.xlu0 %v1673, 113
        %v1690 = vpop.permute.xlu0 %1689
        %1691 = vrot.lane.b32.xlu0 %v1675, 113
        %v1692 = vpop.permute.xlu0 %1691
        %1693 = vrot.lane.b32.xlu0 %v1662, 113
        %v1694 = vpop.permute.xlu0 %1693
        %1695 = vrot.lane.b32.xlu0 %v1664, 113
        %v1696 = vpop.permute.xlu0 %1695
        %1697 = vrot.lane.b32.xlu0 %v1666, 113
        %v1698 = vpop.permute.xlu0 %1697
        %1699 = vrot.lane.b32.xlu0 %v1668, 113
        %v1700 = vpop.permute.xlu0 %1699
        %1701 = vrot.lane.b32.xlu0 %v1670, 113
        %v1702 = vpop.permute.xlu0 %1701
        %1703 = vrot.lane.b32.xlu0 %v1672, 113
        %v1704 = vpop.permute.xlu0 %1703
        %1705 = vrot.lane.b32.xlu0 %v1674, 113
        %v1706 = vpop.permute.xlu0 %1705
        %1707 = vrot.lane.b32.xlu0 %v1676, 113
        %v1708 = vpop.permute.xlu0 %1707
        %v1709 = vsel %vm405, %v1678, %v1694
        %v1710 = vsel %vm405, %v1680, %v1696
        %v1711 = vsel %vm405, %v1682, %v1698
        %v1712 = vsel %vm405, %v1684, %v1700
        %v1713 = vsel %vm405, %v1686, %v1702
        %v1714 = vsel %vm405, %v1688, %v1704
        %v1715 = vsel %vm405, %v1690, %v1706
        %v1716 = vsel %vm405, %v1692, %v1708
        %v1717 = vsel %vm405, %v1694, %v1678
        %v1718 = vsel %vm405, %v1696, %v1680
        %v1719 = vsel %vm405, %v1698, %v1682
        %v1720 = vsel %vm405, %v1700, %v1684
        %v1721 = vsel %vm405, %v1702, %v1686
        %v1722 = vsel %vm405, %v1704, %v1688
        %v1723 = vsel %vm405, %v1706, %v1690
        %v1724 = vsel %vm405, %v1708, %v1692
        %v1725 = vld [vmem:[%s408] ss:$8 sm:$0x3]
        %v1727 = vlaneseq
        %v1728 = vshrl.u32 %v1727, 7
        %v1729 = vsub.s32 0, %v1728
        %v1730 = vrot.slane %v1725, %v1729
        %v1731 = vlaneseq
        %v1732 = vshrl.u32 %v1731, 7
        %v1733 = vsub.s32 1, %v1732
        %v1734 = vrot.slane %v1725, %v1733
        %v1737 = vmul.f32 %v1709, %v1730
        %v1738 = vmul.f32 %v1717, %v1734
        %v1739 = vmul.f32 %v1710, %v1730
        %v1740 = vmul.f32 %v1718, %v1734
        %v1741 = vmul.f32 %v1711, %v1730
        %v1742 = vmul.f32 %v1719, %v1734
        %v1743 = vmul.f32 %v1712, %v1730
        %v1744 = vmul.f32 %v1720, %v1734
        %v1745 = vmul.f32 %v1713, %v1730
        %v1746 = vmul.f32 %v1721, %v1734
        %v1747 = vmul.f32 %v1714, %v1730
        %v1748 = vmul.f32 %v1722, %v1734
        %v1749 = vmul.f32 %v1715, %v1730
        %v1750 = vmul.f32 %v1723, %v1734
        %v1751 = vmul.f32 %v1716, %v1730
        %v1752 = vmul.f32 %v1724, %v1734
        %v1753 = vpack.c.bf16 %v1739, %v1737
        %v1754 = vpack.c.bf16 %v1740, %v1738
        %v1755 = vpack.c.bf16 %v1743, %v1741
        %v1756 = vpack.c.bf16 %v1744, %v1742
        %v1757 = vpack.c.bf16 %v1747, %v1745
        %v1758 = vpack.c.bf16 %v1748, %v1746
        %v1759 = vpack.c.bf16 %v1751, %v1749
        %v1760 = vpack.c.bf16 %v1752, %v1750
        %1761 = vst [vmem:[#allocation3] sm:$0xff] %v1753
        %1762 = vst [vmem:[#allocation3 + $0x8] sm:$0xff] %v1754
        %1763 = vst [vmem:[#allocation3 + $0x10] sm:$0xff] %v1755
        %1764 = vst [vmem:[#allocation3 + $0x18] sm:$0xff] %v1756
        %1765 = vst [vmem:[#allocation3 + $0x20] sm:$0xff] %v1757
        %1766 = vst [vmem:[#allocation3 + $0x28] sm:$0xff] %v1758
        %1767 = vst [vmem:[#allocation3 + $0x30] sm:$0xff] %v1759
        %1768 = vst [vmem:[#allocation3 + $0x38] sm:$0xff] %v1760
        %v1769 = vld [vmem:[#allocation2] sm:$0xff]
        %v1770 = vld [vmem:[#allocation2 + $0x8] sm:$0xff]
        %v1771 = vld [vmem:[#allocation2 + $0x10] sm:$0xff]
        %v1772 = vld [vmem:[#allocation2 + $0x18] sm:$0xff]
        %v1773 = vld [vmem:[#allocation2 + $0x20] sm:$0xff]
        %v1774 = vld [vmem:[#allocation2 + $0x28] sm:$0xff]
        %v1775 = vld [vmem:[#allocation2 + $0x30] sm:$0xff]
        %v1776 = vld [vmem:[#allocation2 + $0x38] sm:$0xff]
        %v1777 = vld [vmem:[#allocation2 + $0x40] sm:$0xff]
        %v1778 = vld [vmem:[#allocation2 + $0x48] sm:$0xff]
        %v1779 = vld [vmem:[#allocation2 + $0x50] sm:$0xff]
        %v1780 = vld [vmem:[#allocation2 + $0x58] sm:$0xff]
        %v1781 = vld [vmem:[#allocation2 + $0x60] sm:$0xff]
        %v1782 = vld [vmem:[#allocation2 + $0x68] sm:$0xff]
        %v1783 = vld [vmem:[#allocation2 + $0x70] sm:$0xff]
        %v1784 = vld [vmem:[#allocation2 + $0x78] sm:$0xff]
        %1785 = vrot.lane.b32.xlu0 %v1769, 112
        %v1786 = vpop.permute.xlu0 %1785
        %1787 = vrot.lane.b32.xlu0 %v1771, 112
        %v1788 = vpop.permute.xlu0 %1787
        %1789 = vrot.lane.b32.xlu0 %v1773, 112
        %v1790 = vpop.permute.xlu0 %1789
        %1791 = vrot.lane.b32.xlu0 %v1775, 112
        %v1792 = vpop.permute.xlu0 %1791
        %1793 = vrot.lane.b32.xlu0 %v1777, 112
        %v1794 = vpop.permute.xlu0 %1793
        %1795 = vrot.lane.b32.xlu0 %v1779, 112
        %v1796 = vpop.permute.xlu0 %1795
        %1797 = vrot.lane.b32.xlu0 %v1781, 112
        %v1798 = vpop.permute.xlu0 %1797
        %1799 = vrot.lane.b32.xlu0 %v1783, 112
        %v1800 = vpop.permute.xlu0 %1799
        %1801 = vrot.lane.b32.xlu0 %v1770, 112
        %v1802 = vpop.permute.xlu0 %1801
        %1803 = vrot.lane.b32.xlu0 %v1772, 112
        %v1804 = vpop.permute.xlu0 %1803
        %1805 = vrot.lane.b32.xlu0 %v1774, 112
        %v1806 = vpop.permute.xlu0 %1805
        %1807 = vrot.lane.b32.xlu0 %v1776, 112
        %v1808 = vpop.permute.xlu0 %1807
        %1809 = vrot.lane.b32.xlu0 %v1778, 112
        %v1810 = vpop.permute.xlu0 %1809
        %1811 = vrot.lane.b32.xlu0 %v1780, 112
        %v1812 = vpop.permute.xlu0 %1811
        %1813 = vrot.lane.b32.xlu0 %v1782, 112
        %v1814 = vpop.permute.xlu0 %1813
        %1815 = vrot.lane.b32.xlu0 %v1784, 112
        %v1816 = vpop.permute.xlu0 %1815
        %v1817 = vsel %vm427, %v1786, %v1802
        %v1818 = vsel %vm427, %v1788, %v1804
        %v1819 = vsel %vm427, %v1790, %v1806
        %v1820 = vsel %vm427, %v1792, %v1808
        %v1821 = vsel %vm427, %v1794, %v1810
        %v1822 = vsel %vm427, %v1796, %v1812
        %v1823 = vsel %vm427, %v1798, %v1814
        %v1824 = vsel %vm427, %v1800, %v1816
        %v1825 = vsel %vm427, %v1802, %v1786
        %v1826 = vsel %vm427, %v1804, %v1788
        %v1827 = vsel %vm427, %v1806, %v1790
        %v1828 = vsel %vm427, %v1808, %v1792
        %v1829 = vsel %vm427, %v1810, %v1794
        %v1830 = vsel %vm427, %v1812, %v1796
        %v1831 = vsel %vm427, %v1814, %v1798
        %v1832 = vsel %vm427, %v1816, %v1800
        %v1833 = vld [vmem:[%s430] ss:$8 sm:$0x3]
        %v1835 = vlaneseq
        %v1836 = vshrl.u32 %v1835, 7
        %v1837 = vsub.s32 0, %v1836
        %v1838 = vrot.slane %v1833, %v1837
        %v1839 = vlaneseq
        %v1840 = vshrl.u32 %v1839, 7
        %v1841 = vsub.s32 1, %v1840
        %v1842 = vrot.slane %v1833, %v1841
        %v1845 = vmul.f32 %v1817, %v1838
        %v1846 = vmul.f32 %v1825, %v1842
        %v1847 = vmul.f32 %v1818, %v1838
        %v1848 = vmul.f32 %v1826, %v1842
        %v1849 = vmul.f32 %v1819, %v1838
        %v1850 = vmul.f32 %v1827, %v1842
        %v1851 = vmul.f32 %v1820, %v1838
        %v1852 = vmul.f32 %v1828, %v1842
        %v1853 = vmul.f32 %v1821, %v1838
        %v1854 = vmul.f32 %v1829, %v1842
        %v1855 = vmul.f32 %v1822, %v1838
        %v1856 = vmul.f32 %v1830, %v1842
        %v1857 = vmul.f32 %v1823, %v1838
        %v1858 = vmul.f32 %v1831, %v1842
        %v1859 = vmul.f32 %v1824, %v1838
        %v1860 = vmul.f32 %v1832, %v1842
        %v1861 = vpack.c.bf16 %v1847, %v1845
        %v1862 = vpack.c.bf16 %v1848, %v1846
        %v1863 = vpack.c.bf16 %v1851, %v1849
        %v1864 = vpack.c.bf16 %v1852, %v1850
        %v1865 = vpack.c.bf16 %v1855, %v1853
        %v1866 = vpack.c.bf16 %v1856, %v1854
        %v1867 = vpack.c.bf16 %v1859, %v1857
        %v1868 = vpack.c.bf16 %v1860, %v1858
        %1869 = vst [vmem:[#allocation3 + $0x40] sm:$0xff] %v1861
        %1870 = vst [vmem:[#allocation3 + $0x48] sm:$0xff] %v1862
        %1871 = vst [vmem:[#allocation3 + $0x50] sm:$0xff] %v1863
        %1872 = vst [vmem:[#allocation3 + $0x58] sm:$0xff] %v1864
        %1873 = vst [vmem:[#allocation3 + $0x60] sm:$0xff] %v1865
        %1874 = vst [vmem:[#allocation3 + $0x68] sm:$0xff] %v1866
        %1875 = vst [vmem:[#allocation3 + $0x70] sm:$0xff] %v1867
        %1876 = vst [vmem:[#allocation3 + $0x78] sm:$0xff] %v1868
        %v1877 = vld [vmem:[#allocation2] sm:$0xff]
        %v1878 = vld [vmem:[#allocation2 + $0x8] sm:$0xff]
        %v1879 = vld [vmem:[#allocation2 + $0x10] sm:$0xff]
        %v1880 = vld [vmem:[#allocation2 + $0x18] sm:$0xff]
        %v1881 = vld [vmem:[#allocation2 + $0x20] sm:$0xff]
        %v1882 = vld [vmem:[#allocation2 + $0x28] sm:$0xff]
        %v1883 = vld [vmem:[#allocation2 + $0x30] sm:$0xff]
        %v1884 = vld [vmem:[#allocation2 + $0x38] sm:$0xff]
        %v1885 = vld [vmem:[#allocation2 + $0x40] sm:$0xff]
        %v1886 = vld [vmem:[#allocation2 + $0x48] sm:$0xff]
        %v1887 = vld [vmem:[#allocation2 + $0x50] sm:$0xff]
        %v1888 = vld [vmem:[#allocation2 + $0x58] sm:$0xff]
        %v1889 = vld [vmem:[#allocation2 + $0x60] sm:$0xff]
        %v1890 = vld [vmem:[#allocation2 + $0x68] sm:$0xff]
        %v1891 = vld [vmem:[#allocation2 + $0x70] sm:$0xff]
        %v1892 = vld [vmem:[#allocation2 + $0x78] sm:$0xff]
        %1893 = vrot.lane.b32.xlu0 %v1877, 111
        %v1894 = vpop.permute.xlu0 %1893
        %1895 = vrot.lane.b32.xlu0 %v1879, 111
        %v1896 = vpop.permute.xlu0 %1895
        %1897 = vrot.lane.b32.xlu0 %v1881, 111
        %v1898 = vpop.permute.xlu0 %1897
        %1899 = vrot.lane.b32.xlu0 %v1883, 111
        %v1900 = vpop.permute.xlu0 %1899
        %1901 = vrot.lane.b32.xlu0 %v1885, 111
        %v1902 = vpop.permute.xlu0 %1901
        %1903 = vrot.lane.b32.xlu0 %v1887, 111
        %v1904 = vpop.permute.xlu0 %1903
        %1905 = vrot.lane.b32.xlu0 %v1889, 111
        %v1906 = vpop.permute.xlu0 %1905
        %1907 = vrot.lane.b32.xlu0 %v1891, 111
        %v1908 = vpop.permute.xlu0 %1907
        %1909 = vrot.lane.b32.xlu0 %v1878, 111
        %v1910 = vpop.permute.xlu0 %1909
        %1911 = vrot.lane.b32.xlu0 %v1880, 111
        %v1912 = vpop.permute.xlu0 %1911
        %1913 = vrot.lane.b32.xlu0 %v1882, 111
        %v1914 = vpop.permute.xlu0 %1913
        %1915 = vrot.lane.b32.xlu0 %v1884, 111
        %v1916 = vpop.permute.xlu0 %1915
        %1917 = vrot.lane.b32.xlu0 %v1886, 111
        %v1918 = vpop.permute.xlu0 %1917
        %1919 = vrot.lane.b32.xlu0 %v1888, 111
        %v1920 = vpop.permute.xlu0 %1919
        %1921 = vrot.lane.b32.xlu0 %v1890, 111
        %v1922 = vpop.permute.xlu0 %1921
        %1923 = vrot.lane.b32.xlu0 %v1892, 111
        %v1924 = vpop.permute.xlu0 %1923
        %v1925 = vsel %vm449, %v1894, %v1910
        %v1926 = vsel %vm449, %v1896, %v1912
        %v1927 = vsel %vm449, %v1898, %v1914
        %v1928 = vsel %vm449, %v1900, %v1916
        %v1929 = vsel %vm449, %v1902, %v1918
        %v1930 = vsel %vm449, %v1904, %v1920
        %v1931 = vsel %vm449, %v1906, %v1922
        %v1932 = vsel %vm449, %v1908, %v1924
        %v1933 = vsel %vm449, %v1910, %v1894
        %v1934 = vsel %vm449, %v1912, %v1896
        %v1935 = vsel %vm449, %v1914, %v1898
        %v1936 = vsel %vm449, %v1916, %v1900
        %v1937 = vsel %vm449, %v1918, %v1902
        %v1938 = vsel %vm449, %v1920, %v1904
        %v1939 = vsel %vm449, %v1922, %v1906
        %v1940 = vsel %vm449, %v1924, %v1908
        %v1941 = vld [vmem:[%s452] ss:$8 sm:$0x3]
        %v1943 = vlaneseq
        %v1944 = vshrl.u32 %v1943, 7
        %v1945 = vsub.s32 0, %v1944
        %v1946 = vrot.slane %v1941, %v1945
        %v1947 = vlaneseq
        %v1948 = vshrl.u32 %v1947, 7
        %v1949 = vsub.s32 1, %v1948
        %v1950 = vrot.slane %v1941, %v1949
        %v1953 = vmul.f32 %v1925, %v1946
        %v1954 = vmul.f32 %v1933, %v1950
        %v1955 = vmul.f32 %v1926, %v1946
        %v1956 = vmul.f32 %v1934, %v1950
        %v1957 = vmul.f32 %v1927, %v1946
        %v1958 = vmul.f32 %v1935, %v1950
        %v1959 = vmul.f32 %v1928, %v1946
        %v1960 = vmul.f32 %v1936, %v1950
        %v1961 = vmul.f32 %v1929, %v1946
        %v1962 = vmul.f32 %v1937, %v1950
        %v1963 = vmul.f32 %v1930, %v1946
        %v1964 = vmul.f32 %v1938, %v1950
        %v1965 = vmul.f32 %v1931, %v1946
        %v1966 = vmul.f32 %v1939, %v1950
        %v1967 = vmul.f32 %v1932, %v1946
        %v1968 = vmul.f32 %v1940, %v1950
        %v1969 = vpack.c.bf16 %v1955, %v1953
        %v1970 = vpack.c.bf16 %v1956, %v1954
        %v1971 = vpack.c.bf16 %v1959, %v1957
        %v1972 = vpack.c.bf16 %v1960, %v1958
        %v1973 = vpack.c.bf16 %v1963, %v1961
        %v1974 = vpack.c.bf16 %v1964, %v1962
        %v1975 = vpack.c.bf16 %v1967, %v1965
        %v1976 = vpack.c.bf16 %v1968, %v1966
        %1977 = vst [vmem:[#allocation3 + $0x80] sm:$0xff] %v1969
        %1978 = vst [vmem:[#allocation3 + $0x88] sm:$0xff] %v1970
        %1979 = vst [vmem:[#allocation3 + $0x90] sm:$0xff] %v1971
        %1980 = vst [vmem:[#allocation3 + $0x98] sm:$0xff] %v1972
        %1981 = vst [vmem:[#allocation3 + $0xa0] sm:$0xff] %v1973
        %1982 = vst [vmem:[#allocation3 + $0xa8] sm:$0xff] %v1974
        %1983 = vst [vmem:[#allocation3 + $0xb0] sm:$0xff] %v1975
        %1984 = vst [vmem:[#allocation3 + $0xb8] sm:$0xff] %v1976
        %v1985 = vld [vmem:[#allocation8 + $0xc] sm:$0xff]
        %v1986 = vld [vmem:[#allocation8 + $0x20] sm:$0xff]
        %v1987 = vld [vmem:[#allocation8 + $0x34] sm:$0xff]
        %v1988 = vld [vmem:[#allocation8 + $0x48] sm:$0xff]
        %v1989 = vld [vmem:[#allocation8 + $0x5c] sm:$0xff]
        %v1990 = vld [vmem:[#allocation8 + $0x70] sm:$0xff]
        %v1991 = vld [vmem:[#allocation8 + $0x84] sm:$0xff]
        %v1992 = vld [vmem:[#allocation8 + $0x98] sm:$0xff]
        %v1993 = vld [vmem:[#allocation3] sm:$0xff]
        %v1994 = vld [vmem:[#allocation3 + $0x8] sm:$0xff]
        %v1995 = vld [vmem:[#allocation3 + $0x10] sm:$0xff]
        %v1996 = vld [vmem:[#allocation3 + $0x18] sm:$0xff]
        %v1997 = vld [vmem:[#allocation3 + $0x20] sm:$0xff]
        %v1998 = vld [vmem:[#allocation3 + $0x28] sm:$0xff]
        %v1999 = vld [vmem:[#allocation3 + $0x30] sm:$0xff]
        %v2000 = vld [vmem:[#allocation3 + $0x38] sm:$0xff]
        %v2001 = vld [vmem:[#allocation3 + $0x40] sm:$0xff]
        %v2002 = vld [vmem:[#allocation3 + $0x48] sm:$0xff]
        %v2003 = vld [vmem:[#allocation3 + $0x50] sm:$0xff]
        %v2004 = vld [vmem:[#allocation3 + $0x58] sm:$0xff]
        %v2005 = vld [vmem:[#allocation3 + $0x60] sm:$0xff]
        %v2006 = vld [vmem:[#allocation3 + $0x68] sm:$0xff]
        %v2007 = vld [vmem:[#allocation3 + $0x70] sm:$0xff]
        %v2008 = vld [vmem:[#allocation3 + $0x78] sm:$0xff]
        %v2009 = vld [vmem:[#allocation3 + $0x80] sm:$0xff]
        %v2010 = vld [vmem:[#allocation3 + $0x88] sm:$0xff]
        %v2011 = vld [vmem:[#allocation3 + $0x90] sm:$0xff]
        %v2012 = vld [vmem:[#allocation3 + $0x98] sm:$0xff]
        %v2013 = vld [vmem:[#allocation3 + $0xa0] sm:$0xff]
        %v2014 = vld [vmem:[#allocation3 + $0xa8] sm:$0xff]
        %v2015 = vld [vmem:[#allocation3 + $0xb0] sm:$0xff]
        %v2016 = vld [vmem:[#allocation3 + $0xb8] sm:$0xff]
        %v2025 = vunpack.c.l.b16 %v1985
        %v2026 = vunpack.c.h.b16 %v1985
        %v2027 = vunpack.c.l.b16 %v1986
        %v2028 = vunpack.c.h.b16 %v1986
        %v2029 = vunpack.c.l.b16 %v1987
        %v2030 = vunpack.c.h.b16 %v1987
        %v2031 = vunpack.c.l.b16 %v1988
        %v2032 = vunpack.c.h.b16 %v1988
        %v2033 = vunpack.c.l.b16 %v1989
        %v2034 = vunpack.c.h.b16 %v1989
        %v2035 = vunpack.c.l.b16 %v1990
        %v2036 = vunpack.c.h.b16 %v1990
        %v2037 = vunpack.c.l.b16 %v1991
        %v2038 = vunpack.c.h.b16 %v1991
        %v2039 = vunpack.c.l.b16 %v1992
        %v2040 = vunpack.c.h.b16 %v1992
        %v2041 = vpack.c.b16 %v2027, %v2025
        %v2042 = vpack.c.b16 %v2028, %v2026
        %v2043 = vpack.c.b16 %v2031, %v2029
        %v2044 = vpack.c.b16 %v2032, %v2030
        %v2045 = vpack.c.b16 %v2035, %v2033
        %v2046 = vpack.c.b16 %v2036, %v2034
        %v2047 = vpack.c.b16 %v2039, %v2037
        %v2048 = vpack.c.b16 %v2040, %v2038
        %v2054 = vsel %vm1088, %v2042, 0
        %v2057 = vsel %vm1088, %v2044, 0
        %v2060 = vsel %vm1088, %v2046, 0
        %v2063 = vsel %vm1088, %v2048, 0
        %2065 = vmatprep.subr.bf16.mxu0 %v1994
        %2066 = vmatpush1.bf16.msra.mxu0 %v1993
        %2067 = vmatprep.subr.bf16.mxu0 %v1996
        %2068 = vmatpush1.bf16.msra.mxu0 %v1995
        %2069 = vmatprep.subr.bf16.mxu0 %v1998
        %2070 = vmatpush1.bf16.msra.mxu0 %v1997
        %2071 = vmatprep.subr.bf16.mxu0 %v2000
        %2072 = vmatpush1.bf16.msra.mxu0 %v1999
        %2073 = vmatprep.subr.bf16.mxu0 %v2002
        %2074 = vmatpush1.bf16.msra.mxu0 %v2001
        %2075 = vmatprep.subr.bf16.mxu0 %v2004
        %2076 = vmatpush1.bf16.msra.mxu0 %v2003
        %2077 = vmatprep.subr.bf16.mxu0 %v2006
        %2078 = vmatpush1.bf16.msra.mxu0 %v2005
        %2079 = vmatprep.subr.bf16.mxu0 %v2008
        %2080 = vmatpush1.bf16.msra.mxu0 %v2007
        %2081 = vmatprep.subr.bf16.mxu0 %v2010
        %2082 = vmatpush1.bf16.msra.mxu0 %v2009
        %2083 = vmatprep.subr.bf16.mxu0 %v2012
        %2084 = vmatpush1.bf16.msra.mxu0 %v2011
        %2085 = vmatprep.subr.bf16.mxu0 %v2014
        %2086 = vmatpush1.bf16.msra.mxu0 %v2013
        %2087 = vmatprep.subr.bf16.mxu0 %v2016
        %2088 = vmatpush1.bf16.msra.mxu0 %v2015
        %2089 = vmatprep.subr.bf16.mxu0 0
        %2090 = vmatpush1.bf16.msra.mxu0 0
        %2091 = vmatprep.subr.bf16.mxu0 0
        %2092 = vmatpush1.bf16.msra.mxu0 0
        %2093 = vmatprep.subr.bf16.mxu0 0
        %2094 = vmatpush1.bf16.msra.mxu0 0
        %2095 = vmatprep.subr.bf16.mxu0 0
        %2096 = vmatpush1.bf16.msra.mxu0 0
        %2097 = vmatprep.mubr.bf16.mxu0 %v2054
        %2098 = vmatmul.mubr.bf16.gmra.mrb[0].mxu0 %v2041
        %v2099 = vpop.f32.mrb[0].mxu0
        %v2100 = vadd.f32 0.0, %v2099
        %v2101 = vpop.f32.mrb[0].mxu0
        %v2102 = vadd.f32 0.0, %v2101
        %v2103 = vpop.f32.mrb[0].mxu0
        %v2104 = vadd.f32 0.0, %v2103
        %v2105 = vpop.f32.mrb[0].mxu0
        %v2106 = vadd.f32 0.0, %v2105
        %2107 = vmatprep.mubr.bf16.mxu0 %v2057
        %2108 = vmatmul.mubr.bf16.gmra.mrb[0].mxu0 %v2043
        %v2109 = vpop.f32.mrb[0].mxu0
        %v2110 = vadd.f32 0.0, %v2109
        %v2111 = vpop.f32.mrb[0].mxu0
        %v2112 = vadd.f32 0.0, %v2111
        %v2113 = vpop.f32.mrb[0].mxu0
        %v2114 = vadd.f32 0.0, %v2113
        %v2115 = vpop.f32.mrb[0].mxu0
        %v2116 = vadd.f32 0.0, %v2115
        %2117 = vmatprep.mubr.bf16.mxu0 %v2060
        %2118 = vmatmul.mubr.bf16.gmra.mrb[0].mxu0 %v2045
        %v2119 = vpop.f32.mrb[0].mxu0
        %v2120 = vadd.f32 0.0, %v2119
        %v2121 = vpop.f32.mrb[0].mxu0
        %v2122 = vadd.f32 0.0, %v2121
        %v2123 = vpop.f32.mrb[0].mxu0
        %v2124 = vadd.f32 0.0, %v2123
        %v2125 = vpop.f32.mrb[0].mxu0
        %v2126 = vadd.f32 0.0, %v2125
        %2127 = vmatprep.mubr.bf16.mxu0 %v2063
        %2128 = vmatmul.mubr.bf16.gmra.mrb[0].mxu0 %v2047
        %v2129 = vpop.f32.mrb[0].mxu0
        %v2130 = vadd.f32 0.0, %v2129
        %v2131 = vpop.f32.mrb[0].mxu0
        %v2132 = vadd.f32 0.0, %v2131
        %v2133 = vpop.f32.mrb[0].mxu0
        %v2134 = vadd.f32 0.0, %v2133
        %v2135 = vpop.f32.mrb[0].mxu0
        %v2136 = vadd.f32 0.0, %v2135
        %2137 = vdwg.mxu0
        %v2138 = vld [vmem:[#allocation4] sm:$0xff]
        %v2139 = vld [vmem:[#allocation4 + $0x8] sm:$0xff]
        %v2140 = vld [vmem:[#allocation4 + $0x10] sm:$0xff]
        %v2141 = vld [vmem:[#allocation4 + $0x18] sm:$0xff]
        %v2142 = vld [vmem:[#allocation4 + $0x20] sm:$0xff]
        %v2143 = vld [vmem:[#allocation4 + $0x28] sm:$0xff]
        %v2144 = vld [vmem:[#allocation4 + $0x30] sm:$0xff]
        %v2145 = vld [vmem:[#allocation4 + $0x38] sm:$0xff]
        %v2146 = vld [vmem:[#allocation4 + $0x40] sm:$0xff]
        %v2147 = vld [vmem:[#allocation4 + $0x48] sm:$0xff]
        %v2148 = vld [vmem:[#allocation4 + $0x50] sm:$0xff]
        %v2149 = vld [vmem:[#allocation4 + $0x58] sm:$0xff]
        %v2150 = vld [vmem:[#allocation4 + $0x60] sm:$0xff]
        %v2151 = vld [vmem:[#allocation4 + $0x68] sm:$0xff]
        %v2152 = vld [vmem:[#allocation4 + $0x70] sm:$0xff]
        %v2153 = vld [vmem:[#allocation4 + $0x78] sm:$0xff]
        %v2154 = vadd.f32 %v2138, %v2100
        %v2155 = vadd.f32 %v2139, %v2102
        %v2156 = vadd.f32 %v2140, %v2104
        %v2157 = vadd.f32 %v2141, %v2106
        %v2158 = vadd.f32 %v2142, %v2110
        %v2159 = vadd.f32 %v2143, %v2112
        %v2160 = vadd.f32 %v2144, %v2114
        %v2161 = vadd.f32 %v2145, %v2116
        %v2162 = vadd.f32 %v2146, %v2120
        %v2163 = vadd.f32 %v2147, %v2122
        %v2164 = vadd.f32 %v2148, %v2124
        %v2165 = vadd.f32 %v2149, %v2126
        %v2166 = vadd.f32 %v2150, %v2130
        %v2167 = vadd.f32 %v2151, %v2132
        %v2168 = vadd.f32 %v2152, %v2134
        %v2169 = vadd.f32 %v2153, %v2136
        %2170 = vst [vmem:[#allocation4] sm:$0xff] %v2154
        %2171 = vst [vmem:[#allocation4 + $0x8] sm:$0xff] %v2155
        %2172 = vst [vmem:[#allocation4 + $0x10] sm:$0xff] %v2156
        %2173 = vst [vmem:[#allocation4 + $0x18] sm:$0xff] %v2157
        %2174 = vst [vmem:[#allocation4 + $0x20] sm:$0xff] %v2158
        %2175 = vst [vmem:[#allocation4 + $0x28] sm:$0xff] %v2159
        %2176 = vst [vmem:[#allocation4 + $0x30] sm:$0xff] %v2160
        %2177 = vst [vmem:[#allocation4 + $0x38] sm:$0xff] %v2161
        %2178 = vst [vmem:[#allocation4 + $0x40] sm:$0xff] %v2162
        %2179 = vst [vmem:[#allocation4 + $0x48] sm:$0xff] %v2163
        %2180 = vst [vmem:[#allocation4 + $0x50] sm:$0xff] %v2164
        %2181 = vst [vmem:[#allocation4 + $0x58] sm:$0xff] %v2165
        %2182 = vst [vmem:[#allocation4 + $0x60] sm:$0xff] %v2166
        %2183 = vst [vmem:[#allocation4 + $0x68] sm:$0xff] %v2167
        %2184 = vst [vmem:[#allocation4 + $0x70] sm:$0xff] %v2168
        %2185 = vst [vmem:[#allocation4 + $0x78] sm:$0xff] %v2169
        %v2186 = vld [vmem:[%s4] sm:$0xff]
        %v2187 = vld [vmem:[%s4 + $0x8] sm:$0xff]
        %v2188 = vld [vmem:[%s4 + $0x10] sm:$0xff]
        %v2189 = vld [vmem:[%s4 + $0x18] sm:$0xff]
        %v2190 = vld [vmem:[%s4 + $0x20] sm:$0xff]
        %v2191 = vld [vmem:[%s4 + $0x28] sm:$0xff]
        %v2192 = vld [vmem:[%s4 + $0x30] sm:$0xff]
        %v2193 = vld [vmem:[%s4 + $0x38] sm:$0xff]
        %2195 = vset.pattern.permute.xlu0 0
        %2196 = vperm.xlu0 %2195, %v2186
        %v2197 = vpop.permute.xlu0 %2196
        %2200 = vset.pattern.permute.xlu0 0
        %2201 = vperm.xlu0 %2200, %v2187
        %v2202 = vpop.permute.xlu0 %2201
        %2205 = vset.pattern.permute.xlu0 0
        %2206 = vperm.xlu0 %2205, %v2188
        %v2207 = vpop.permute.xlu0 %2206
        %2210 = vset.pattern.permute.xlu0 0
        %2211 = vperm.xlu0 %2210, %v2189
        %v2212 = vpop.permute.xlu0 %2211
        %2215 = vset.pattern.permute.xlu0 0
        %2216 = vperm.xlu0 %2215, %v2190
        %v2217 = vpop.permute.xlu0 %2216
        %2220 = vset.pattern.permute.xlu0 0
        %2221 = vperm.xlu0 %2220, %v2191
        %v2222 = vpop.permute.xlu0 %2221
        %2225 = vset.pattern.permute.xlu0 0
        %2226 = vperm.xlu0 %2225, %v2192
        %v2227 = vpop.permute.xlu0 %2226
        %2230 = vset.pattern.permute.xlu0 0
        %2231 = vperm.xlu0 %2230, %v2193
        %v2232 = vpop.permute.xlu0 %2231
        %v2234 = vld [vmem:[#allocation4] sm:$0xff]
        %v2235 = vld [vmem:[#allocation4 + $0x8] sm:$0xff]
        %v2236 = vld [vmem:[#allocation4 + $0x10] sm:$0xff]
        %v2237 = vld [vmem:[#allocation4 + $0x18] sm:$0xff]
        %v2238 = vld [vmem:[#allocation4 + $0x20] sm:$0xff]
        %v2239 = vld [vmem:[#allocation4 + $0x28] sm:$0xff]
        %v2240 = vld [vmem:[#allocation4 + $0x30] sm:$0xff]
        %v2241 = vld [vmem:[#allocation4 + $0x38] sm:$0xff]
        %v2242 = vld [vmem:[#allocation4 + $0x40] sm:$0xff]
        %v2243 = vld [vmem:[#allocation4 + $0x48] sm:$0xff]
        %v2244 = vld [vmem:[#allocation4 + $0x50] sm:$0xff]
        %v2245 = vld [vmem:[#allocation4 + $0x58] sm:$0xff]
        %v2246 = vld [vmem:[#allocation4 + $0x60] sm:$0xff]
        %v2247 = vld [vmem:[#allocation4 + $0x68] sm:$0xff]
        %v2248 = vld [vmem:[#allocation4 + $0x70] sm:$0xff]
        %v2249 = vld [vmem:[#allocation4 + $0x78] sm:$0xff]
        %v2250 = vadd.f32 %v2234, %v2197
        %v2251 = vadd.f32 %v2235, %v2197
        %v2252 = vadd.f32 %v2236, %v2202
        %v2253 = vadd.f32 %v2237, %v2202
        %v2254 = vadd.f32 %v2238, %v2207
        %v2255 = vadd.f32 %v2239, %v2207
        %v2256 = vadd.f32 %v2240, %v2212
        %v2257 = vadd.f32 %v2241, %v2212
        %v2258 = vadd.f32 %v2242, %v2217
        %v2259 = vadd.f32 %v2243, %v2217
        %v2260 = vadd.f32 %v2244, %v2222
        %v2261 = vadd.f32 %v2245, %v2222
        %v2262 = vadd.f32 %v2246, %v2227
        %v2263 = vadd.f32 %v2247, %v2227
        %v2264 = vadd.f32 %v2248, %v2232
        %v2265 = vadd.f32 %v2249, %v2232
        %v2266 = vmax.f32 %v2250, 0.0
        %v2267 = vmax.f32 %v2251, 0.0
        %v2268 = vmax.f32 %v2252, 0.0
        %v2269 = vmax.f32 %v2253, 0.0
        %v2270 = vmax.f32 %v2254, 0.0
        %v2271 = vmax.f32 %v2255, 0.0
        %v2272 = vmax.f32 %v2256, 0.0
        %v2273 = vmax.f32 %v2257, 0.0
        %v2274 = vmax.f32 %v2258, 0.0
        %v2275 = vmax.f32 %v2259, 0.0
        %v2276 = vmax.f32 %v2260, 0.0
        %v2277 = vmax.f32 %v2261, 0.0
        %v2278 = vmax.f32 %v2262, 0.0
        %v2279 = vmax.f32 %v2263, 0.0
        %v2280 = vmax.f32 %v2264, 0.0
        %v2281 = vmax.f32 %v2265, 0.0
        %2282 = vst [vmem:[%s272] sm:$0xff] %v2266
        %2283 = vst [vmem:[%s272 + $0x8] sm:$0xff] %v2267
        %2284 = vst [vmem:[%s272 + $0x10] sm:$0xff] %v2268
        %2285 = vst [vmem:[%s272 + $0x18] sm:$0xff] %v2269
        %2286 = vst [vmem:[%s272 + $0x20] sm:$0xff] %v2270
        %2287 = vst [vmem:[%s272 + $0x28] sm:$0xff] %v2271
        %2288 = vst [vmem:[%s272 + $0x30] sm:$0xff] %v2272
        %2289 = vst [vmem:[%s272 + $0x38] sm:$0xff] %v2273
        %2290 = vst [vmem:[%s272 + $0x40] sm:$0xff] %v2274
        %2291 = vst [vmem:[%s272 + $0x48] sm:$0xff] %v2275
        %2292 = vst [vmem:[%s272 + $0x50] sm:$0xff] %v2276
        %2293 = vst [vmem:[%s272 + $0x58] sm:$0xff] %v2277
        %2294 = vst [vmem:[%s272 + $0x60] sm:$0xff] %v2278
        %2295 = vst [vmem:[%s272 + $0x68] sm:$0xff] %v2279
        %2296 = vst [vmem:[%s272 + $0x70] sm:$0xff] %v2280
        %2297 = vst [vmem:[%s272 + $0x78] sm:$0xff] %v2281
        %s2298 = sand.u32 %s161, 1
        %s2299 = scalar_lea.sflag [#allocation7], %s2298
        %s2300 = sand.u32 %s161, 1
        %s2301 = smul.addr %s2300, 128
        %s2302 = scalar_lea.vmem [#allocation10], %s2301
        // Predicated region
        $region53: #{tpu_custom_call.1} parent=43 // pred_check
          %p2303 = pneg %p171
        $region54: #{tpu_custom_call.1} parent=43 // pred_check_branch
          %2305 = sbr.rel (%p2303) target = $region56
        $region55: #{tpu_custom_call.1} parent=43 // pred_region
          %s2307 = ssub.s32 2048, 2048
          %2308 = vsyncadd %s2299, %s2307
          %s2309 = smul.addr %s22, 16
          %s2310 = smul.addr %s2309, 128
          %s2311 = scalar_lea.hbm %s6, %s2310
          %s2312 = sshll.u32 %s2302, 4
          %s2313 = int_to_ptr.vmem [resolvable:$true] %s2312
          %2318 = dma.vmem_to_hbm [thread:$0]  %s2313, 2048, %s2311, %s2299, 256, 256, 16
        $region56: #{tpu_custom_call.1} parent=43 // pred_fallthru
          _
      $region44: #{tpu_custom_call.1} parent=5 // pred_fallthru
        _
      %p2319 = scmp.le.s32.totalorder 2, %s17
      // Predicated region
      $region57: #{tpu_custom_call.1} parent=5 // pred_check
        %p2320 = pneg %p2319
      $region58: #{tpu_custom_call.1} parent=5 // pred_check_branch
        %2322 = sbr.rel (%p2320) target = $region60
      $region59: #{tpu_custom_call.1} parent=5 // pred_region
        %s2323 = ssub.s32 %s17, 2
        // Predicated region
        $region61: #{tpu_custom_call.1} parent=59 // pred_check
          %p2324 = pneg %p177
        $region62: #{tpu_custom_call.1} parent=59 // pred_check_branch
          %2326 = sbr.rel (%p2324) target = $region64
        $region63: #{tpu_custom_call.1} parent=59 // pred_region
          %s2327 = sand.u32 %s162, 1
          %s2328 = scalar_lea.sflag [#allocation7], %s2327
          %s2329 = sand.u32 %s162, 1
          %s2330 = smul.addr %s2329, 128
          %s2331 = scalar_lea.vmem [#allocation10], %s2330
          %2332 = dma.done %s2328, 2048
        $region64: #{tpu_custom_call.1} parent=59 // pred_fallthru
          _
      $region60: #{tpu_custom_call.1} parent=5 // pred_fallthru
        _
    $region6: #{tpu_custom_call.1} parent=1 // loop_footer
      %s21 = sadd.s32 1, %s17
    $region7: #{tpu_custom_call.1} parent=1 // loop_footer_branch
      %16 = sbr.rel target = $region3
    $region8: #{tpu_custom_call.1} parent=1 // loop_exit
      _
    %2333 = vsyncpa [#allocation6], 1
    %s2334 = scalar_lea.sflag [#allocation6], 1
    %2335 = vsyncpa %s2334, 1
    %2336 = vsyncpa [#allocation9], 1
    %2337 = vsyncpa [#allocation7], 1
    %s2338 = scalar_lea.sflag [#allocation7], 1
    %2339 = vsyncpa %s2338, 1

</llo_original>
